<compile_context>
chip_gen: v5e
topology: v5e:2x2
jax: 0.10.0
libtpu: 0.0.40
codegen_flags: <defaults>
</compile_context>

<pallas_src>
import jax
import jax.numpy as jnp
from jax.experimental import pallas as pl
from jax.experimental.pallas import tpu as pltpu

INPUT_SIZE = 2       # x:(N,1) and t:(N,1) -> 2 input features
HIDDEN_SIZE = 200    # matches `hidden_size = 200` in the source module
HIDDEN_PAD = 256     # padded hidden dim (two full 128-lane groups)
OUTPUT_SIZE = 1
BATCH = 256          # demo batch -> grid of 2 x 128-row tiles


def _silu(v):
    # SiLU(v) = v * sigmoid(v) = 0.5 * v * (tanh(v/2) + 1):
    # one EUP tanh + cheap VPU mul/add, no f32 vector divide.
    return 0.5 * v * (jnp.tanh(0.5 * v) + 1.0)


def mlp_kernel(xt_ref, w1_ref, w2_ref, w3_ref, vecs_ref, o_ref):
    # vecs rows: 0 = b2, 1 = b3, 2 = w4 (as a row), 3 = b4 (lane 0), 4-7 = zero.
    b2 = vecs_ref[0:1, :]
    b3 = vecs_ref[1:2, :]
    w4 = vecs_ref[2:3, :]
    b4 = vecs_ref[3:4, 0:1]

    # Layer 1: tiny K=8 MXU matmul on the packed [x, t, 1, 0...] input
    # (bias b1 is folded into the "ones" row of w1).  Kept in f32.
    h = _silu(jnp.dot(xt_ref[...], w1_ref[...],
                      preferred_element_type=jnp.float32))

    # Layers 2 & 3: bf16 MXU matmuls with f32 accumulation, f32 bias + SiLU.
    h = _silu(jnp.dot(h.astype(jnp.bfloat16), w2_ref[...],
                      preferred_element_type=jnp.float32) + b2)
    h = _silu(jnp.dot(h.astype(jnp.bfloat16), w3_ref[...],
                      preferred_element_type=jnp.float32) + b3)

    # Layer 4 (H -> 1): VPU multiply, add the two 128-lane halves on the VPU,
    # then a single 128-lane XLU reduction (instead of a 256-lane reduce).
    hw = h * w4
    half = hw[:, :HIDDEN_PAD // 2] + hw[:, HIDDEN_PAD // 2:]
    out = jnp.sum(half, axis=-1, keepdims=True) + b4
    o_ref[...] = out.astype(o_ref.dtype)


def _round_up(n, m):
    return ((n + m - 1) // m) * m


def _choose_tile_m(n):
    """Row tile: as large as possible (capped at 4096, VMEM-safe on
    v5e/v6e/v7x with the explicit vmem limit below) while keeping >= 2 grid
    steps so the 'parallel' row axis can shard across v7x's two TensorCores.
    The batch is padded to a multiple of the tile in the wrapper, so there is
    no single-step fallback for awkward batch sizes."""
    if n <= 16:
        return 8
    return min(4096, _round_up((n + 1) // 2, 8))


def _prepare_params(params):
    """Pad hidden 200 -> 256, fold b1 into the layer-1 weight, cast W2/W3 to
    bf16, and pack the remaining small vectors into one (8, HIDDEN_PAD) array."""
    w1, b1, w2, b2, w3, b3, w4, b4 = params
    h = w1.shape[1]
    p = HIDDEN_PAD - h

    # Layer-1 weight for the packed [x, t, 1, 0, 0, 0, 0, 0] input (b1 folded).
    w1p = jnp.zeros((8, HIDDEN_PAD), jnp.float32)
    w1p = w1p.at[0:2, :h].set(w1)
    w1p = w1p.at[2, :h].set(b1[0])

    w2p = jnp.pad(w2, ((0, p), (0, p))).astype(jnp.bfloat16)
    w3p = jnp.pad(w3, ((0, p), (0, p))).astype(jnp.bfloat16)

    vecs = jnp.zeros((8, HIDDEN_PAD), jnp.float32)
    vecs = vecs.at[0, :h].set(b2[0])       # layer-2 bias
    vecs = vecs.at[1, :h].set(b3[0])       # layer-3 bias
    vecs = vecs.at[2, :h].set(w4[:, 0])    # layer-4 weight as a row
    vecs = vecs.at[3, 0].set(b4[0, 0])     # layer-4 bias (scalar)
    return w1p, w2p, w3p, vecs


@jax.jit
def mushydata_forward(x, t, params):
    """x: (N,1) f32, t: (N,1) f32. Returns (N, OUTPUT_SIZE) f32."""
    n = x.shape[0]
    tm = _choose_tile_m(n)
    n_pad = _round_up(n, tm)

    # Pack [x, t, 1], zero-pad to 8 input columns and n_pad rows.  Padded rows
    # produce harmless finite values and are sliced off below.
    xt = jnp.concatenate([x, t, jnp.ones_like(x)], axis=1)
    xt = jnp.pad(xt, ((0, n_pad - n), (0, 8 - xt.shape[1])))

    w1p, w2p, w3p, vecs = _prepare_params(params)

    def const_spec(arr):
        # Block index never changes across the grid -> fetched once.
        # TODO(synk): pipeline_mode=pl.Buffered(1) would also drop the redundant
        # second buffer (~0.5 MiB VMEM); omitted for maximum compile safety.
        return pl.BlockSpec(arr.shape, lambda i: (0, 0))

    out = pl.pallas_call(
        mlp_kernel,
        out_shape=jax.ShapeDtypeStruct((n_pad, OUTPUT_SIZE), jnp.float32),
        grid_spec=pltpu.PrefetchScalarGridSpec(
            num_scalar_prefetch=0,
            grid=(n_pad // tm,),
            in_specs=[
                pl.BlockSpec((tm, 8), lambda i: (i, 0)),   # packed [x, t, 1]
                const_spec(w1p),
                const_spec(w2p),
                const_spec(w3p),
                const_spec(vecs),
            ],
            out_specs=pl.BlockSpec((tm, OUTPUT_SIZE), lambda i: (i, 0)),
        ),
        compiler_params=pltpu.CompilerParams(
            dimension_semantics=("parallel",),
            # tm=4096 worst-case activation scratch stays well under this even
            # with poor temp reuse; raises v5e's 16 MiB scoped default and keeps
            # headroom under v7x's 64 MiB physical VMEM.
            vmem_limit_bytes=48 * 1024 * 1024,
        ),
    )(xt, w1p, w2p, w3p, vecs)
    return out[:n]


def init_params(key):
    """Deterministic init mimicking torch.nn.Linear default (U[-1/sqrt(fan_in), +]).
    Weights stored as (in_features, out_features) so y = x @ W + b == torch x @ W^T + b."""
    dims = [(INPUT_SIZE, HIDDEN_SIZE),
            (HIDDEN_SIZE, HIDDEN_SIZE),
            (HIDDEN_SIZE, HIDDEN_SIZE),
            (HIDDEN_SIZE, OUTPUT_SIZE)]
    params = []
    for (fan_in, fan_out) in dims:
        key, kw, kb = jax.random.split(key, 3)
        bound = 1.0 / (fan_in ** 0.5)
        w = jax.random.uniform(kw, (fan_in, fan_out), jnp.float32, -bound, bound)
        b = jax.random.uniform(kb, (1, fan_out), jnp.float32, -bound, bound)
        params.extend([w, b])
    return tuple(params)


def reference_forward(x, t, params):
    xt = jnp.concatenate([x, t], axis=1)
    w1, b1, w2, b2, w3, b3, w4, b4 = params
    h = jax.nn.silu(xt @ w1 + b1)
    h = jax.nn.silu(h @ w2 + b2)
    h = jax.nn.silu(h @ w3 + b3)
    return h @ w4 + b4


if __name__ == "__main__":
    key = jax.random.PRNGKey(0)
    k_x, k_t, k_p = jax.random.split(key, 3)
    x = jax.random.normal(k_x, (BATCH, 1), jnp.float32)
    t = jax.random.uniform(k_t, (BATCH, 1), jnp.float32)
    params = init_params(k_p)

    out = mushydata_forward(x, t, params)
    out = jax.block_until_ready(out)

    ref = reference_forward(x, t, params)
    assert out.shape == (BATCH, OUTPUT_SIZE)
    # Layers 2/3 use bf16 MXU matmuls (f32 accumulate), so compare against the
    # f32 reference with a consciously relaxed tolerance (per perf review).
    assert jnp.allclose(out, ref, atol=3e-2, rtol=3e-2), "mismatch vs reference"
    print("KERNEL_OK")
</pallas_src>

<mosaic_0001>
module attributes {stable_mosaic.version = 11 : i64} {
  func.func @mlp_kernel(%arg0: i32, %arg1: memref<128x8xf32, #tpu.memory_space<vmem>>, %arg2: memref<8x256xf32, #tpu.memory_space<vmem>>, %arg3: memref<256x256xbf16, #tpu.memory_space<vmem>>, %arg4: memref<256x256xbf16, #tpu.memory_space<vmem>>, %arg5: memref<8x256xf32, #tpu.memory_space<vmem>>, %arg6: memref<128x1xf32, #tpu.memory_space<vmem>>) attributes {dimension_semantics = [#tpu.dimension_semantics<parallel>], iteration_bounds = array<i64: 2>, scalar_prefetch = 0 : i64, scratch_operands = 0 : i64, tpu.core_type = #tpu.core_type<tc>, window_params = [{transform_indices = @transform_0, window_bounds = array<i64: 128, 8>}, {pipeline_mode = #tpu.pipeline_mode<synchronous>, transform_indices = @transform_1, window_bounds = array<i64: 8, 256>}, {pipeline_mode = #tpu.pipeline_mode<synchronous>, transform_indices = @transform_2, window_bounds = array<i64: 256, 256>}, {pipeline_mode = #tpu.pipeline_mode<synchronous>, transform_indices = @transform_3, window_bounds = array<i64: 256, 256>}, {pipeline_mode = #tpu.pipeline_mode<synchronous>, transform_indices = @transform_4, window_bounds = array<i64: 8, 256>}, {transform_indices = @transform_5, window_bounds = array<i64: 128, 1>}]} {
    %c0 = arith.constant 0 : index
    %c0_0 = arith.constant 0 : index
    %0 = vector.load %arg5[%c0, %c0_0] : memref<8x256xf32, #tpu.memory_space<vmem>>, vector<1x256xf32>
    %c1 = arith.constant 1 : index
    %c0_1 = arith.constant 0 : index
    %1 = vector.load %arg5[%c1, %c0_1] : memref<8x256xf32, #tpu.memory_space<vmem>>, vector<1x256xf32>
    %c2 = arith.constant 2 : index
    %c0_2 = arith.constant 0 : index
    %2 = vector.load %arg5[%c2, %c0_2] : memref<8x256xf32, #tpu.memory_space<vmem>>, vector<1x256xf32>
    %c3 = arith.constant 3 : index
    %c0_3 = arith.constant 0 : index
    %3 = vector.load %arg5[%c3, %c0_3] : memref<8x256xf32, #tpu.memory_space<vmem>>, vector<1x1xf32>
    %c0_4 = arith.constant 0 : index
    %c0_5 = arith.constant 0 : index
    %4 = vector.load %arg1[%c0_4, %c0_5] : memref<128x8xf32, #tpu.memory_space<vmem>>, vector<128x8xf32>
    %c0_6 = arith.constant 0 : index
    %c0_7 = arith.constant 0 : index
    %5 = vector.load %arg2[%c0_6, %c0_7] : memref<8x256xf32, #tpu.memory_space<vmem>>, vector<8x256xf32>
    %cst = arith.constant dense<0.000000e+00> : vector<128x256xf32>
    %6 = tpu.matmul %4, %5, %cst {dimension_numbers = #tpu.dot_dimension_numbers<[1], [0], [0], [1], [0, 0, 1, 1], [], []>} : vector<128x8xf32>, vector<8x256xf32>, vector<128x256xf32> -> vector<128x256xf32>
    %cst_8 = arith.constant 5.000000e-01 : f32
    %7 = vector.broadcast %cst_8 : f32 to vector<128x256xf32>
    %8 = arith.mulf %7, %6 : vector<128x256xf32>
    %cst_9 = arith.constant 5.000000e-01 : f32
    %9 = vector.broadcast %cst_9 : f32 to vector<128x256xf32>
    %10 = arith.mulf %9, %6 : vector<128x256xf32>
    %11 = math.tanh %10 : vector<128x256xf32>
    %cst_10 = arith.constant 1.000000e+00 : f32
    %12 = vector.broadcast %cst_10 : f32 to vector<128x256xf32>
    %13 = arith.addf %11, %12 : vector<128x256xf32>
    %14 = arith.mulf %8, %13 : vector<128x256xf32>
    %15 = arith.truncf %14 : vector<128x256xf32> to vector<128x256xbf16>
    %c0_11 = arith.constant 0 : index
    %c0_12 = arith.constant 0 : index
    %16 = vector.load %arg3[%c0_11, %c0_12] : memref<256x256xbf16, #tpu.memory_space<vmem>>, vector<256x256xbf16>
    %cst_13 = arith.constant dense<0.000000e+00> : vector<128x256xf32>
    %17 = tpu.matmul %15, %16, %cst_13 {dimension_numbers = #tpu.dot_dimension_numbers<[1], [0], [0], [1], [0, 0, 1, 1], [], []>} : vector<128x256xbf16>, vector<256x256xbf16>, vector<128x256xf32> -> vector<128x256xf32>
    %18 = vector.broadcast %0 : vector<1x256xf32> to vector<128x256xf32>
    %19 = arith.addf %17, %18 : vector<128x256xf32>
    %cst_14 = arith.constant 5.000000e-01 : f32
    %20 = vector.broadcast %cst_14 : f32 to vector<128x256xf32>
    %21 = arith.mulf %20, %19 : vector<128x256xf32>
    %cst_15 = arith.constant 5.000000e-01 : f32
    %22 = vector.broadcast %cst_15 : f32 to vector<128x256xf32>
    %23 = arith.mulf %22, %19 : vector<128x256xf32>
    %24 = math.tanh %23 : vector<128x256xf32>
    %cst_16 = arith.constant 1.000000e+00 : f32
    %25 = vector.broadcast %cst_16 : f32 to vector<128x256xf32>
    %26 = arith.addf %24, %25 : vector<128x256xf32>
    %27 = arith.mulf %21, %26 : vector<128x256xf32>
    %28 = arith.truncf %27 : vector<128x256xf32> to vector<128x256xbf16>
    %c0_17 = arith.constant 0 : index
    %c0_18 = arith.constant 0 : index
    %29 = vector.load %arg4[%c0_17, %c0_18] : memref<256x256xbf16, #tpu.memory_space<vmem>>, vector<256x256xbf16>
    %cst_19 = arith.constant dense<0.000000e+00> : vector<128x256xf32>
    %30 = tpu.matmul %28, %29, %cst_19 {dimension_numbers = #tpu.dot_dimension_numbers<[1], [0], [0], [1], [0, 0, 1, 1], [], []>} : vector<128x256xbf16>, vector<256x256xbf16>, vector<128x256xf32> -> vector<128x256xf32>
    %31 = vector.broadcast %1 : vector<1x256xf32> to vector<128x256xf32>
    %32 = arith.addf %30, %31 : vector<128x256xf32>
    %cst_20 = arith.constant 5.000000e-01 : f32
    %33 = vector.broadcast %cst_20 : f32 to vector<128x256xf32>
    %34 = arith.mulf %33, %32 : vector<128x256xf32>
    %cst_21 = arith.constant 5.000000e-01 : f32
    %35 = vector.broadcast %cst_21 : f32 to vector<128x256xf32>
    %36 = arith.mulf %35, %32 : vector<128x256xf32>
    %37 = math.tanh %36 : vector<128x256xf32>
    %cst_22 = arith.constant 1.000000e+00 : f32
    %38 = vector.broadcast %cst_22 : f32 to vector<128x256xf32>
    %39 = arith.addf %37, %38 : vector<128x256xf32>
    %40 = arith.mulf %34, %39 : vector<128x256xf32>
    %41 = vector.broadcast %2 : vector<1x256xf32> to vector<128x256xf32>
    %42 = arith.mulf %40, %41 : vector<128x256xf32>
    %43 = vector.extract_strided_slice %42 {offsets = [0, 0], sizes = [128, 128], strides = [1, 1]} : vector<128x256xf32> to vector<128x128xf32>
    %44 = vector.extract_strided_slice %42 {offsets = [0, 128], sizes = [128, 128], strides = [1, 1]} : vector<128x256xf32> to vector<128x128xf32>
    %45 = arith.addf %43, %44 : vector<128x128xf32>
    %cst_23 = arith.constant dense<0.000000e+00> : vector<128xf32>
    %46 = vector.multi_reduction <add>, %45, %cst_23 [1] : vector<128x128xf32> to vector<128xf32>
    %47 = vector.shape_cast %46 : vector<128xf32> to vector<128x1xf32>
    %48 = vector.broadcast %3 : vector<1x1xf32> to vector<128x1xf32>
    %49 = arith.addf %47, %48 : vector<128x1xf32>
    %c0_24 = arith.constant 0 : index
    %c0_25 = arith.constant 0 : index
    %50 = vector.load %arg6[%c0_24, %c0_25] : memref<128x1xf32, #tpu.memory_space<vmem>>, vector<128x1xf32>
    tpu.vector_store %arg6[%c0_24, %c0_25], %49 {strides = array<i32>} : memref<128x1xf32, #tpu.memory_space<vmem>>, vector<128x1xf32>,
    return
  }
  func.func @transform_0(%arg0: i32) -> (i32, i32) {
    %c0_i32 = arith.constant 0 : i32
    %c0_i32_0 = arith.constant 0 : i32
    return %arg0, %c0_i32 : i32, i32
  }
  func.func @transform_1(%arg0: i32) -> (i32, i32) {
    %c0_i32 = arith.constant 0 : i32
    %c0_i32_0 = arith.constant 0 : i32
    %c0_i32_1 = arith.constant 0 : i32
    return %c0_i32, %c0_i32_0 : i32, i32
  }
  func.func @transform_2(%arg0: i32) -> (i32, i32) {
    %c0_i32 = arith.constant 0 : i32
    %c0_i32_0 = arith.constant 0 : i32
    %c0_i32_1 = arith.constant 0 : i32
    return %c0_i32, %c0_i32_0 : i32, i32
  }
  func.func @transform_3(%arg0: i32) -> (i32, i32) {
    %c0_i32 = arith.constant 0 : i32
    %c0_i32_0 = arith.constant 0 : i32
    %c0_i32_1 = arith.constant 0 : i32
    return %c0_i32, %c0_i32_0 : i32, i32
  }
  func.func @transform_4(%arg0: i32) -> (i32, i32) {
    %c0_i32 = arith.constant 0 : i32
    %c0_i32_0 = arith.constant 0 : i32
    %c0_i32_1 = arith.constant 0 : i32
    return %c0_i32, %c0_i32_0 : i32, i32
  }
  func.func @transform_5(%arg0: i32) -> (i32, i32) {
    %c0_i32 = arith.constant 0 : i32
    %c0_i32_0 = arith.constant 0 : i32
    return %arg0, %c0_i32 : i32, i32
  }
}

</mosaic_0001>

<llo_original>
// kernel: mushydata_forward.1
$region0: #{mushydata_forward.1}
  #allocation0 [shape = 'u32[]', space=smem, size = 0x4, offset = 0x4, fixed_abs, tag = 'smem constant byte address 0x4 - core index']
  #allocation1 [shape = 'u32[72,128]{1,0:T(1,128)}', space=vmem, size = 0x9000, scoped, tag = 'internal scratch']
  %s0 = inlined_call_operand.vmem [shape: f32[256,8], index: 0, kind: input, shape index: {}]
  %s1 = inlined_call_operand.vmem [shape: f32[8,256], index: 1, kind: input, shape index: {}]
  %s2 = inlined_call_operand.vmem [shape: bf16[256,256], index: 2, kind: input, shape index: {}]
  %s3 = inlined_call_operand.vmem [shape: bf16[256,256], index: 3, kind: input, shape index: {}]
  %s4 = inlined_call_operand.vmem [shape: f32[8,256], index: 4, kind: input, shape index: {}]
  %s5 = inlined_call_operand.vmem [shape: f32[256,1], index: 5, kind: output, shape index: {}]
  %s6 = sld [smem:[#allocation0]]
  $region53: #{mushydata_forward.1} parent=0
    _
  %s8 = ssub.s32 1, %s6
  %s9 = scalar_select 0, %s8, %s6
  loop: start=0, step=1, limit=4
  $region2: #{mushydata_forward.1} parent=0 // loop_pre_header
    _
  $region3: #{mushydata_forward.1} parent=0 // loop_header
    %s11 = sphi 0, %s15
    %p12 = scmp.ge.s32.totalorder %s11, 4
    %s21 = sphi 0, %s23
    %s24 = sphi 0, %s21
    %s25 = sphi 0, %s24
    %s41 = sphi 0, %s25
    %s45 = sphi 0, %s45
    %s47 = sphi 0, %s45
    %s48 = sphi 0, %s47
    %s62 = sphi 0, %s48
    %s66 = sphi 0, %s66
    %s68 = sphi 0, %s66
    %s69 = sphi 0, %s68
    %s83 = sphi 0, %s69
    %s87 = sphi 0, %s87
    %s89 = sphi 0, %s87
    %s90 = sphi 0, %s89
    %s104 = sphi 0, %s90
    %s108 = sphi 0, %s108
    %s110 = sphi 0, %s108
    %s111 = sphi 0, %s110
    %s125 = sphi 0, %s111
    %s131 = sphi 0, %s133
    %s134 = sphi 0, %s131
    %s135 = sphi 0, %s134
    %s151 = sphi 0, %s135
  $region4: #{mushydata_forward.1} parent=0 // loop_header_branch
    %14 = sbr.rel (%p12) target = $region8
  $region5: #{mushydata_forward.1} parent=0 // loop_body
    %s16 = ssub.s32 %s11, 1
    %s17 = ssub.s32 %s11, 2
    %s18 = sadd.s32 %s11, 1
    %s19 = ssub.s32 %s11, %s18
    %p20 = scmp.eq.s32.totalorder %s19, 0
    %s22 = sadd.s32 %s21, 1
    %s23 = scalar_select %p20, %s21, %s22
    %p26 = pneg %p20
    %p27 = scmp.eq.s32.totalorder %s11, 1
    %p28 = por %p26, %p27
    %p29 = scmp.ne.s32.totalorder %s21, %s24
    %p30 = scmp.eq.s32.totalorder %s11, 0
    %p31 = por %p29, %p30
    %p32 = scmp.ne.s32.totalorder %s21, %s24
    %p33 = scmp.eq.s32.totalorder %s16, 1
    %p34 = por %p32, %p33
    %p35 = scmp.ne.s32.totalorder %s24, %s25
    %p36 = scmp.eq.s32.totalorder %s16, 0
    %p37 = por %p35, %p36
    %p38 = scmp.ne.s32.totalorder %s24, %s25
    %p39 = scmp.eq.s32.totalorder %s17, 1
    %p40 = por %p38, %p39
    %p42 = scmp.ne.s32.totalorder %s25, %s41
    %p43 = scmp.eq.s32.totalorder %s17, 0
    %p44 = por %p42, %p43
    %s46 = sadd.s32 %s45, 1
    %p49 = scmp.eq.s32.totalorder %s11, 1
    %p50 = scmp.ne.s32.totalorder %s45, %s47
    %p51 = scmp.eq.s32.totalorder %s11, 0
    %p52 = por %p50, %p51
    %p53 = scmp.ne.s32.totalorder %s45, %s47
    %p54 = scmp.eq.s32.totalorder %s16, 1
    %p55 = por %p53, %p54
    %p56 = scmp.ne.s32.totalorder %s47, %s48
    %p57 = scmp.eq.s32.totalorder %s16, 0
    %p58 = por %p56, %p57
    %p59 = scmp.ne.s32.totalorder %s47, %s48
    %p60 = scmp.eq.s32.totalorder %s17, 1
    %p61 = por %p59, %p60
    %p63 = scmp.ne.s32.totalorder %s48, %s62
    %p64 = scmp.eq.s32.totalorder %s17, 0
    %p65 = por %p63, %p64
    %s67 = sadd.s32 %s66, 1
    %p70 = scmp.eq.s32.totalorder %s11, 1
    %p71 = scmp.ne.s32.totalorder %s66, %s68
    %p72 = scmp.eq.s32.totalorder %s11, 0
    %p73 = por %p71, %p72
    %p74 = scmp.ne.s32.totalorder %s66, %s68
    %p75 = scmp.eq.s32.totalorder %s16, 1
    %p76 = por %p74, %p75
    %p77 = scmp.ne.s32.totalorder %s68, %s69
    %p78 = scmp.eq.s32.totalorder %s16, 0
    %p79 = por %p77, %p78
    %p80 = scmp.ne.s32.totalorder %s68, %s69
    %p81 = scmp.eq.s32.totalorder %s17, 1
    %p82 = por %p80, %p81
    %p84 = scmp.ne.s32.totalorder %s69, %s83
    %p85 = scmp.eq.s32.totalorder %s17, 0
    %p86 = por %p84, %p85
    %s88 = sadd.s32 %s87, 1
    %p91 = scmp.eq.s32.totalorder %s11, 1
    %p92 = scmp.ne.s32.totalorder %s87, %s89
    %p93 = scmp.eq.s32.totalorder %s11, 0
    %p94 = por %p92, %p93
    %p95 = scmp.ne.s32.totalorder %s87, %s89
    %p96 = scmp.eq.s32.totalorder %s16, 1
    %p97 = por %p95, %p96
    %p98 = scmp.ne.s32.totalorder %s89, %s90
    %p99 = scmp.eq.s32.totalorder %s16, 0
    %p100 = por %p98, %p99
    %p101 = scmp.ne.s32.totalorder %s89, %s90
    %p102 = scmp.eq.s32.totalorder %s17, 1
    %p103 = por %p101, %p102
    %p105 = scmp.ne.s32.totalorder %s90, %s104
    %p106 = scmp.eq.s32.totalorder %s17, 0
    %p107 = por %p105, %p106
    %s109 = sadd.s32 %s108, 1
    %p112 = scmp.eq.s32.totalorder %s11, 1
    %p113 = scmp.ne.s32.totalorder %s108, %s110
    %p114 = scmp.eq.s32.totalorder %s11, 0
    %p115 = por %p113, %p114
    %p116 = scmp.ne.s32.totalorder %s108, %s110
    %p117 = scmp.eq.s32.totalorder %s16, 1
    %p118 = por %p116, %p117
    %p119 = scmp.ne.s32.totalorder %s110, %s111
    %p120 = scmp.eq.s32.totalorder %s16, 0
    %p121 = por %p119, %p120
    %p122 = scmp.ne.s32.totalorder %s110, %s111
    %p123 = scmp.eq.s32.totalorder %s17, 1
    %p124 = por %p122, %p123
    %p126 = scmp.ne.s32.totalorder %s111, %s125
    %p127 = scmp.eq.s32.totalorder %s17, 0
    %p128 = por %p126, %p127
    %s129 = ssub.s32 %s11, %s18
    %p130 = scmp.eq.s32.totalorder %s129, 0
    %s132 = sadd.s32 %s131, 1
    %s133 = scalar_select %p130, %s131, %s132
    %p136 = pneg %p130
    %p137 = scmp.eq.s32.totalorder %s11, 1
    %p138 = por %p136, %p137
    %p139 = scmp.ne.s32.totalorder %s131, %s134
    %p140 = scmp.eq.s32.totalorder %s11, 0
    %p141 = por %p139, %p140
    %p142 = scmp.ne.s32.totalorder %s131, %s134
    %p143 = scmp.eq.s32.totalorder %s16, 1
    %p144 = por %p142, %p143
    %p145 = scmp.ne.s32.totalorder %s134, %s135
    %p146 = scmp.eq.s32.totalorder %s16, 0
    %p147 = por %p145, %p146
    %p148 = scmp.ne.s32.totalorder %s134, %s135
    %p149 = scmp.eq.s32.totalorder %s17, 1
    %p150 = por %p148, %p149
    %p152 = scmp.ne.s32.totalorder %s135, %s151
    %p153 = scmp.eq.s32.totalorder %s17, 0
    %p154 = por %p152, %p153
    %p155 = scmp.le.s32.totalorder 1, %s11
    %p156 = scmp.lt.s32.totalorder %s11, 3
    %p157 = pnand %p155, %p156
    %p158 = pneg %p157
    // Predicated region
    $region9: #{mushydata_forward.1} parent=5 // pred_check
      _
    $region10: #{mushydata_forward.1} parent=5 // pred_check_branch
      %160 = sbr.rel (%p157) target = $region12
    $region11: #{mushydata_forward.1} parent=5 // pred_region
      %s161 = ssub.s32 %s11, 1
      // Predicated region
      $region13: #{mushydata_forward.1} parent=11 // pred_check
        %p162 = pneg %p58
      $region14: #{mushydata_forward.1} parent=11 // pred_check_branch
        %164 = sbr.rel (%p162) target = $region16
      $region15: #{mushydata_forward.1} parent=11 // pred_region
        _
      $region16: #{mushydata_forward.1} parent=11 // pred_fallthru
        _
      // Predicated region
      $region17: #{mushydata_forward.1} parent=11 // pred_check
        %p165 = pneg %p79
      $region18: #{mushydata_forward.1} parent=11 // pred_check_branch
        %167 = sbr.rel (%p165) target = $region20
      $region19: #{mushydata_forward.1} parent=11 // pred_region
        _
      $region20: #{mushydata_forward.1} parent=11 // pred_fallthru
        _
      // Predicated region
      $region21: #{mushydata_forward.1} parent=11 // pred_check
        %p168 = pneg %p100
      $region22: #{mushydata_forward.1} parent=11 // pred_check_branch
        %170 = sbr.rel (%p168) target = $region24
      $region23: #{mushydata_forward.1} parent=11 // pred_region
        _
      $region24: #{mushydata_forward.1} parent=11 // pred_fallthru
        _
      // Predicated region
      $region25: #{mushydata_forward.1} parent=11 // pred_check
        %p171 = pneg %p121
      $region26: #{mushydata_forward.1} parent=11 // pred_check_branch
        %173 = sbr.rel (%p171) target = $region28
      $region27: #{mushydata_forward.1} parent=11 // pred_region
        _
      $region28: #{mushydata_forward.1} parent=11 // pred_fallthru
        _
    $region12: #{mushydata_forward.1} parent=5 // pred_fallthru
      _
    %p174 = scmp.lt.s32.totalorder %s11, 2
    // Predicated region
    $region29: #{mushydata_forward.1} parent=5 // pred_check
      %p175 = pneg %p174
    $region30: #{mushydata_forward.1} parent=5 // pred_check_branch
      %177 = sbr.rel (%p175) target = $region32
    $region31: #{mushydata_forward.1} parent=5 // pred_region
      // Predicated region
      $region33: #{mushydata_forward.1} parent=31 // pred_check
        %p178 = pneg %p31
      $region34: #{mushydata_forward.1} parent=31 // pred_check_branch
        %180 = sbr.rel (%p178) target = $region36
      $region35: #{mushydata_forward.1} parent=31 // pred_region
        %s181 = smul.u32 16, %s11
        %p182 = scmp.lt.s32.totalorder %s181, 31
        %s183 = scalar_select %p182, %s181, 31
        %s184 = smul.addr %s183, 8
        %s185 = scalar_lea.vmem %s0, %s184
        %s186 = smul.u32 16, %s11
      $region36: #{mushydata_forward.1} parent=31 // pred_fallthru
        _
    $region32: #{mushydata_forward.1} parent=5 // pred_fallthru
      _
    %p187 = scmp.le.s32.totalorder 1, %s11
    %p188 = scmp.lt.s32.totalorder %s11, 3
    %p189 = pnand %p187, %p188
    %p190 = pneg %p189
    // Predicated region
    $region37: #{mushydata_forward.1} parent=5 // pred_check
      _
    $region38: #{mushydata_forward.1} parent=5 // pred_check_branch
      %192 = sbr.rel (%p189) target = $region40
    $region39: #{mushydata_forward.1} parent=5 // pred_region
      %s193 = ssub.s32 %s11, 1
      %s194 = smul.u32 16, %s16
      %p195 = scmp.lt.s32.totalorder %s194, 31
      %s196 = scalar_select %p195, %s194, 31
      %s197 = smul.addr %s196, 8
      %s198 = scalar_lea.vmem %s0, %s197
      %p199 = pneg %p37
      %p200 = pneg %p34
      %p201 = pneg %p58
      %p202 = pneg %p55
      %p203 = pneg %p79
      %p204 = pneg %p76
      %p205 = pneg %p100
      %p206 = pneg %p97
      %p207 = pneg %p121
      %p208 = pneg %p118
      %p209 = pneg %p147
      %p210 = pneg %p144
      %s211 = smul.u32 16, %s16
      %p212 = scmp.lt.s32.totalorder %s211, 31
      %s213 = scalar_select %p212, %s211, 31
      %s214 = smul.addr %s213, 8
      %s215 = scalar_lea.vmem %s5, %s214
      %s216 = smul.u32 16, %s16
      %p217 = scmp.lt.s32.totalorder %s216, 31
      %s218 = scalar_select %p217, %s216, 31
      %s219 = smul.addr %s218, 8
      %s220 = scalar_lea.vmem %s0, %s219
      %s221 = smul.u32 16, %s16
      %s222 = smul.u32 16, %s16
      %p223 = scmp.lt.s32.totalorder %s222, 31
      %s224 = scalar_select %p223, %s222, 31
      %s225 = smul.addr %s224, 8
      %s226 = scalar_lea.vmem %s5, %s225
      %s227 = smul.u32 16, %s16
      %v228 = vld [vmem:[%s4] ss:$8 sm:$0x3]
      %s229 = scalar_lea.vmem %s4, 1
      %v230 = vld [vmem:[%s229] ss:$8 sm:$0x3]
      %s231 = scalar_lea.vmem %s4, 2
      %v232 = vld [vmem:[%s231] ss:$8 sm:$0x3]
      %v233 = vld [vmem:[%s4 + $0x3] ss:$0 sm:$0xff]
      %v234 = vld [vmem:[%s220] sm:$0xff]
      %v235 = vld [vmem:[%s220 + $0x8] sm:$0xff]
      %v236 = vld [vmem:[%s220 + $0x10] sm:$0xff]
      %v237 = vld [vmem:[%s220 + $0x18] sm:$0xff]
      %v238 = vld [vmem:[%s220 + $0x20] sm:$0xff]
      %v239 = vld [vmem:[%s220 + $0x28] sm:$0xff]
      %v240 = vld [vmem:[%s220 + $0x30] sm:$0xff]
      %v241 = vld [vmem:[%s220 + $0x38] sm:$0xff]
      %v242 = vld [vmem:[%s220 + $0x40] sm:$0xff]
      %v243 = vld [vmem:[%s220 + $0x48] sm:$0xff]
      %v244 = vld [vmem:[%s220 + $0x50] sm:$0xff]
      %v245 = vld [vmem:[%s220 + $0x58] sm:$0xff]
      %v246 = vld [vmem:[%s220 + $0x60] sm:$0xff]
      %v247 = vld [vmem:[%s220 + $0x68] sm:$0xff]
      %v248 = vld [vmem:[%s220 + $0x70] sm:$0xff]
      %v249 = vld [vmem:[%s220 + $0x78] sm:$0xff]
      %v250 = vld [vmem:[%s1] sm:$0xff]
      %v251 = vld [vmem:[%s1 + $0x8] sm:$0xff]
      %vm252 = vcmask 64512
      %v254 = vsel %vm252, %v234, 0
      %v257 = vsel %vm252, %v235, 0
      %v260 = vsel %vm252, %v236, 0
      %v263 = vsel %vm252, %v237, 0
      %v266 = vsel %vm252, %v238, 0
      %v269 = vsel %vm252, %v239, 0
      %v272 = vsel %vm252, %v240, 0
      %v275 = vsel %vm252, %v241, 0
      %v278 = vsel %vm252, %v242, 0
      %v281 = vsel %vm252, %v243, 0
      %v284 = vsel %vm252, %v244, 0
      %v287 = vsel %vm252, %v245, 0
      %v290 = vsel %vm252, %v246, 0
      %v293 = vsel %vm252, %v247, 0
      %v296 = vsel %vm252, %v248, 0
      %v299 = vsel %vm252, %v249, 0
      %301 = vmatpush.msra.mxu0 0.0
      %302 = vmatpush.msra.mxu0 0.0
      %303 = vmatpush.msra.mxu0 0.0
      %304 = vmatpush.msra.mxu0 0.0
      %305 = vmatpush.msra.mxu0 0.0
      %306 = vmatpush.msra.mxu0 0.0
      %307 = vmatpush.msra.mxu0 0.0
      %308 = vmatpush.msra.mxu0 0.0
      %309 = vmatpush.msra.mxu0 0.0
      %310 = vmatpush.msra.mxu0 0.0
      %311 = vmatpush.msra.mxu0 0.0
      %312 = vmatpush.msra.mxu0 0.0
      %313 = vmatpush.msra.mxu0 0.0
      %314 = vmatpush.msra.mxu0 0.0
      %315 = vmatpush.msra.mxu0 0.0
      %316 = vmatpush.msra.mxu0 %v250
      %317 = vmatmul.f32.gmra.mxu0 %v254
      %v318 = vpop.f32.mrf.mxu0
      %v319 = vadd.f32 0.0, %v318
      %320 = vmatmul.f32.gmra.mxu0 %v257
      %v321 = vpop.f32.mrf.mxu0
      %v322 = vadd.f32 0.0, %v321
      %323 = vmatmul.f32.gmra.mxu0 %v260
      %v324 = vpop.f32.mrf.mxu0
      %v325 = vadd.f32 0.0, %v324
      %326 = vmatmul.f32.gmra.mxu0 %v263
      %v327 = vpop.f32.mrf.mxu0
      %v328 = vadd.f32 0.0, %v327
      %329 = vmatmul.f32.gmra.mxu0 %v266
      %v330 = vpop.f32.mrf.mxu0
      %v331 = vadd.f32 0.0, %v330
      %332 = vmatmul.f32.gmra.mxu0 %v269
      %v333 = vpop.f32.mrf.mxu0
      %v334 = vadd.f32 0.0, %v333
      %335 = vmatmul.f32.gmra.mxu0 %v272
      %v336 = vpop.f32.mrf.mxu0
      %v337 = vadd.f32 0.0, %v336
      %338 = vmatmul.f32.gmra.mxu0 %v275
      %v339 = vpop.f32.mrf.mxu0
      %v340 = vadd.f32 0.0, %v339
      %341 = vmatmul.f32.gmra.mxu0 %v278
      %v342 = vpop.f32.mrf.mxu0
      %v343 = vadd.f32 0.0, %v342
      %344 = vmatmul.f32.gmra.mxu0 %v281
      %v345 = vpop.f32.mrf.mxu0
      %v346 = vadd.f32 0.0, %v345
      %347 = vmatmul.f32.gmra.mxu0 %v284
      %v348 = vpop.f32.mrf.mxu0
      %v349 = vadd.f32 0.0, %v348
      %350 = vmatmul.f32.gmra.mxu0 %v287
      %v351 = vpop.f32.mrf.mxu0
      %v352 = vadd.f32 0.0, %v351
      %353 = vmatmul.f32.gmra.mxu0 %v290
      %v354 = vpop.f32.mrf.mxu0
      %v355 = vadd.f32 0.0, %v354
      %356 = vmatmul.f32.gmra.mxu0 %v293
      %v357 = vpop.f32.mrf.mxu0
      %v358 = vadd.f32 0.0, %v357
      %359 = vmatmul.f32.gmra.mxu0 %v296
      %v360 = vpop.f32.mrf.mxu0
      %v361 = vadd.f32 0.0, %v360
      %362 = vmatmul.f32.gmra.mxu0 %v299
      %v363 = vpop.f32.mrf.mxu0
      %v364 = vadd.f32 0.0, %v363
      %365 = vdwg.mxu0
      %366 = vmatpush.msra.mxu0 0.0
      %367 = vmatpush.msra.mxu0 0.0
      %368 = vmatpush.msra.mxu0 0.0
      %369 = vmatpush.msra.mxu0 0.0
      %370 = vmatpush.msra.mxu0 0.0
      %371 = vmatpush.msra.mxu0 0.0
      %372 = vmatpush.msra.mxu0 0.0
      %373 = vmatpush.msra.mxu0 0.0
      %374 = vmatpush.msra.mxu0 0.0
      %375 = vmatpush.msra.mxu0 0.0
      %376 = vmatpush.msra.mxu0 0.0
      %377 = vmatpush.msra.mxu0 0.0
      %378 = vmatpush.msra.mxu0 0.0
      %379 = vmatpush.msra.mxu0 0.0
      %380 = vmatpush.msra.mxu0 0.0
      %381 = vmatpush.msra.mxu0 %v251
      %382 = vmatmul.f32.gmra.mxu0 %v254
      %v383 = vpop.f32.mrf.mxu0
      %v384 = vadd.f32 0.0, %v383
      %385 = vmatmul.f32.gmra.mxu0 %v257
      %v386 = vpop.f32.mrf.mxu0
      %v387 = vadd.f32 0.0, %v386
      %388 = vmatmul.f32.gmra.mxu0 %v260
      %v389 = vpop.f32.mrf.mxu0
      %v390 = vadd.f32 0.0, %v389
      %391 = vmatmul.f32.gmra.mxu0 %v263
      %v392 = vpop.f32.mrf.mxu0
      %v393 = vadd.f32 0.0, %v392
      %394 = vmatmul.f32.gmra.mxu0 %v266
      %v395 = vpop.f32.mrf.mxu0
      %v396 = vadd.f32 0.0, %v395
      %397 = vmatmul.f32.gmra.mxu0 %v269
      %v398 = vpop.f32.mrf.mxu0
      %v399 = vadd.f32 0.0, %v398
      %400 = vmatmul.f32.gmra.mxu0 %v272
      %v401 = vpop.f32.mrf.mxu0
      %v402 = vadd.f32 0.0, %v401
      %403 = vmatmul.f32.gmra.mxu0 %v275
      %v404 = vpop.f32.mrf.mxu0
      %v405 = vadd.f32 0.0, %v404
      %406 = vmatmul.f32.gmra.mxu0 %v278
      %v407 = vpop.f32.mrf.mxu0
      %v408 = vadd.f32 0.0, %v407
      %409 = vmatmul.f32.gmra.mxu0 %v281
      %v410 = vpop.f32.mrf.mxu0
      %v411 = vadd.f32 0.0, %v410
      %412 = vmatmul.f32.gmra.mxu0 %v284
      %v413 = vpop.f32.mrf.mxu0
      %v414 = vadd.f32 0.0, %v413
      %415 = vmatmul.f32.gmra.mxu0 %v287
      %v416 = vpop.f32.mrf.mxu0
      %v417 = vadd.f32 0.0, %v416
      %418 = vmatmul.f32.gmra.mxu0 %v290
      %v419 = vpop.f32.mrf.mxu0
      %v420 = vadd.f32 0.0, %v419
      %421 = vmatmul.f32.gmra.mxu0 %v293
      %v422 = vpop.f32.mrf.mxu0
      %v423 = vadd.f32 0.0, %v422
      %424 = vmatmul.f32.gmra.mxu0 %v296
      %v425 = vpop.f32.mrf.mxu0
      %v426 = vadd.f32 0.0, %v425
      %427 = vmatmul.f32.gmra.mxu0 %v299
      %v428 = vpop.f32.mrf.mxu0
      %v429 = vadd.f32 0.0, %v428
      %430 = vdwg.mxu0
      %v431 = vmul.f32 %v319, 0.5
      %v432 = vmul.f32 %v384, 0.5
      %v433 = vmul.f32 %v322, 0.5
      %v434 = vmul.f32 %v387, 0.5
      %v435 = vmul.f32 %v325, 0.5
      %v436 = vmul.f32 %v390, 0.5
      %v437 = vmul.f32 %v328, 0.5
      %v438 = vmul.f32 %v393, 0.5
      %v439 = vmul.f32 %v331, 0.5
      %v440 = vmul.f32 %v396, 0.5
      %v441 = vmul.f32 %v334, 0.5
      %v442 = vmul.f32 %v399, 0.5
      %v443 = vmul.f32 %v337, 0.5
      %v444 = vmul.f32 %v402, 0.5
      %v445 = vmul.f32 %v340, 0.5
      %v446 = vmul.f32 %v405, 0.5
      %v447 = vmul.f32 %v343, 0.5
      %v448 = vmul.f32 %v408, 0.5
      %v449 = vmul.f32 %v346, 0.5
      %v450 = vmul.f32 %v411, 0.5
      %v451 = vmul.f32 %v349, 0.5
      %v452 = vmul.f32 %v414, 0.5
      %v453 = vmul.f32 %v352, 0.5
      %v454 = vmul.f32 %v417, 0.5
      %v455 = vmul.f32 %v355, 0.5
      %v456 = vmul.f32 %v420, 0.5
      %v457 = vmul.f32 %v358, 0.5
      %v458 = vmul.f32 %v423, 0.5
      %v459 = vmul.f32 %v361, 0.5
      %v460 = vmul.f32 %v426, 0.5
      %v461 = vmul.f32 %v364, 0.5
      %v462 = vmul.f32 %v429, 0.5
      %v463 = vtanh.pop %v431
      %v464 = vtanh.pop %v432
      %v465 = vtanh.pop %v433
      %v466 = vtanh.pop %v434
      %v467 = vtanh.pop %v435
      %v468 = vtanh.pop %v436
      %v469 = vtanh.pop %v437
      %v470 = vtanh.pop %v438
      %v471 = vtanh.pop %v439
      %v472 = vtanh.pop %v440
      %v473 = vtanh.pop %v441
      %v474 = vtanh.pop %v442
      %v475 = vtanh.pop %v443
      %v476 = vtanh.pop %v444
      %v477 = vtanh.pop %v445
      %v478 = vtanh.pop %v446
      %v479 = vtanh.pop %v447
      %v480 = vtanh.pop %v448
      %v481 = vtanh.pop %v449
      %v482 = vtanh.pop %v450
      %v483 = vtanh.pop %v451
      %v484 = vtanh.pop %v452
      %v485 = vtanh.pop %v453
      %v486 = vtanh.pop %v454
      %v487 = vtanh.pop %v455
      %v488 = vtanh.pop %v456
      %v489 = vtanh.pop %v457
      %v490 = vtanh.pop %v458
      %v491 = vtanh.pop %v459
      %v492 = vtanh.pop %v460
      %v493 = vtanh.pop %v461
      %v494 = vtanh.pop %v462
      %v495 = vadd.f32 %v463, 1.0
      %v496 = vadd.f32 %v464, 1.0
      %v497 = vadd.f32 %v465, 1.0
      %v498 = vadd.f32 %v466, 1.0
      %v499 = vadd.f32 %v467, 1.0
      %v500 = vadd.f32 %v468, 1.0
      %v501 = vadd.f32 %v469, 1.0
      %v502 = vadd.f32 %v470, 1.0
      %v503 = vadd.f32 %v471, 1.0
      %v504 = vadd.f32 %v472, 1.0
      %v505 = vadd.f32 %v473, 1.0
      %v506 = vadd.f32 %v474, 1.0
      %v507 = vadd.f32 %v475, 1.0
      %v508 = vadd.f32 %v476, 1.0
      %v509 = vadd.f32 %v477, 1.0
      %v510 = vadd.f32 %v478, 1.0
      %v511 = vadd.f32 %v479, 1.0
      %v512 = vadd.f32 %v480, 1.0
      %v513 = vadd.f32 %v481, 1.0
      %v514 = vadd.f32 %v482, 1.0
      %v515 = vadd.f32 %v483, 1.0
      %v516 = vadd.f32 %v484, 1.0
      %v517 = vadd.f32 %v485, 1.0
      %v518 = vadd.f32 %v486, 1.0
      %v519 = vadd.f32 %v487, 1.0
      %v520 = vadd.f32 %v488, 1.0
      %v521 = vadd.f32 %v489, 1.0
      %v522 = vadd.f32 %v490, 1.0
      %v523 = vadd.f32 %v491, 1.0
      %v524 = vadd.f32 %v492, 1.0
      %v525 = vadd.f32 %v493, 1.0
      %v526 = vadd.f32 %v494, 1.0
      %v527 = vmul.f32 %v431, %v495
      %v528 = vmul.f32 %v432, %v496
      %v529 = vmul.f32 %v433, %v497
      %v530 = vmul.f32 %v434, %v498
      %v531 = vmul.f32 %v435, %v499
      %v532 = vmul.f32 %v436, %v500
      %v533 = vmul.f32 %v437, %v501
      %v534 = vmul.f32 %v438, %v502
      %v535 = vmul.f32 %v439, %v503
      %v536 = vmul.f32 %v440, %v504
      %v537 = vmul.f32 %v441, %v505
      %v538 = vmul.f32 %v442, %v506
      %v539 = vmul.f32 %v443, %v507
      %v540 = vmul.f32 %v444, %v508
      %v541 = vmul.f32 %v445, %v509
      %v542 = vmul.f32 %v446, %v510
      %v543 = vmul.f32 %v447, %v511
      %v544 = vmul.f32 %v448, %v512
      %v545 = vmul.f32 %v449, %v513
      %v546 = vmul.f32 %v450, %v514
      %v547 = vmul.f32 %v451, %v515
      %v548 = vmul.f32 %v452, %v516
      %v549 = vmul.f32 %v453, %v517
      %v550 = vmul.f32 %v454, %v518
      %v551 = vmul.f32 %v455, %v519
      %v552 = vmul.f32 %v456, %v520
      %v553 = vmul.f32 %v457, %v521
      %v554 = vmul.f32 %v458, %v522
      %v555 = vmul.f32 %v459, %v523
      %v556 = vmul.f32 %v460, %v524
      %v557 = vmul.f32 %v461, %v525
      %v558 = vmul.f32 %v462, %v526
      %v559 = vpack.c.bf16 %v529, %v527
      %v560 = vpack.c.bf16 %v530, %v528
      %v561 = vpack.c.bf16 %v533, %v531
      %v562 = vpack.c.bf16 %v534, %v532
      %v563 = vpack.c.bf16 %v537, %v535
      %v564 = vpack.c.bf16 %v538, %v536
      %v565 = vpack.c.bf16 %v541, %v539
      %v566 = vpack.c.bf16 %v542, %v540
      %v567 = vpack.c.bf16 %v545, %v543
      %v568 = vpack.c.bf16 %v546, %v544
      %v569 = vpack.c.bf16 %v549, %v547
      %v570 = vpack.c.bf16 %v550, %v548
      %v571 = vpack.c.bf16 %v553, %v551
      %v572 = vpack.c.bf16 %v554, %v552
      %v573 = vpack.c.bf16 %v557, %v555
      %v574 = vpack.c.bf16 %v558, %v556
      %v575 = vld [vmem:[%s2] sm:$0xff]
      %v576 = vld [vmem:[%s2 + $0x8] sm:$0xff]
      %v577 = vld [vmem:[%s2 + $0x10] sm:$0xff]
      %v578 = vld [vmem:[%s2 + $0x18] sm:$0xff]
      %v579 = vld [vmem:[%s2 + $0x20] sm:$0xff]
      %v580 = vld [vmem:[%s2 + $0x28] sm:$0xff]
      %v581 = vld [vmem:[%s2 + $0x30] sm:$0xff]
      %v582 = vld [vmem:[%s2 + $0x38] sm:$0xff]
      %v583 = vld [vmem:[%s2 + $0x40] sm:$0xff]
      %v584 = vld [vmem:[%s2 + $0x48] sm:$0xff]
      %v585 = vld [vmem:[%s2 + $0x50] sm:$0xff]
      %v586 = vld [vmem:[%s2 + $0x58] sm:$0xff]
      %v587 = vld [vmem:[%s2 + $0x60] sm:$0xff]
      %v588 = vld [vmem:[%s2 + $0x68] sm:$0xff]
      %v589 = vld [vmem:[%s2 + $0x70] sm:$0xff]
      %v590 = vld [vmem:[%s2 + $0x78] sm:$0xff]
      %v591 = vld [vmem:[%s2 + $0x80] sm:$0xff]
      %v592 = vld [vmem:[%s2 + $0x88] sm:$0xff]
      %v593 = vld [vmem:[%s2 + $0x90] sm:$0xff]
      %v594 = vld [vmem:[%s2 + $0x98] sm:$0xff]
      %v595 = vld [vmem:[%s2 + $0xa0] sm:$0xff]
      %v596 = vld [vmem:[%s2 + $0xa8] sm:$0xff]
      %v597 = vld [vmem:[%s2 + $0xb0] sm:$0xff]
      %v598 = vld [vmem:[%s2 + $0xb8] sm:$0xff]
      %v599 = vld [vmem:[%s2 + $0xc0] sm:$0xff]
      %v600 = vld [vmem:[%s2 + $0xc8] sm:$0xff]
      %v601 = vld [vmem:[%s2 + $0xd0] sm:$0xff]
      %v602 = vld [vmem:[%s2 + $0xd8] sm:$0xff]
      %v603 = vld [vmem:[%s2 + $0xe0] sm:$0xff]
      %v604 = vld [vmem:[%s2 + $0xe8] sm:$0xff]
      %v605 = vld [vmem:[%s2 + $0xf0] sm:$0xff]
      %v606 = vld [vmem:[%s2 + $0xf8] sm:$0xff]
      %v608 = vperm.slane %v228, 0
      %v609 = vperm.slane %v228, 1
      %v644 = vunpack.c.l.b16 %v575
      %v645 = vunpack.c.h.b16 %v575
      %v646 = vunpack.c.l.b16 %v576
      %v647 = vunpack.c.h.b16 %v576
      %v648 = vunpack.c.l.b16 %v577
      %v649 = vunpack.c.h.b16 %v577
      %v650 = vunpack.c.l.b16 %v578
      %v651 = vunpack.c.h.b16 %v578
      %v652 = vunpack.c.l.b16 %v579
      %v653 = vunpack.c.h.b16 %v579
      %v654 = vunpack.c.l.b16 %v580
      %v655 = vunpack.c.h.b16 %v580
      %v656 = vunpack.c.l.b16 %v581
      %v657 = vunpack.c.h.b16 %v581
      %v658 = vunpack.c.l.b16 %v582
      %v659 = vunpack.c.h.b16 %v582
      %v660 = vunpack.c.l.b16 %v583
      %v661 = vunpack.c.h.b16 %v583
      %v662 = vunpack.c.l.b16 %v584
      %v663 = vunpack.c.h.b16 %v584
      %v664 = vunpack.c.l.b16 %v585
      %v665 = vunpack.c.h.b16 %v585
      %v666 = vunpack.c.l.b16 %v586
      %v667 = vunpack.c.h.b16 %v586
      %v668 = vunpack.c.l.b16 %v587
      %v669 = vunpack.c.h.b16 %v587
      %v670 = vunpack.c.l.b16 %v588
      %v671 = vunpack.c.h.b16 %v588
      %v672 = vunpack.c.l.b16 %v589
      %v673 = vunpack.c.h.b16 %v589
      %v674 = vunpack.c.l.b16 %v590
      %v675 = vunpack.c.h.b16 %v590
      %v676 = vunpack.c.l.b16 %v591
      %v677 = vunpack.c.h.b16 %v591
      %v678 = vunpack.c.l.b16 %v592
      %v679 = vunpack.c.h.b16 %v592
      %v680 = vunpack.c.l.b16 %v593
      %v681 = vunpack.c.h.b16 %v593
      %v682 = vunpack.c.l.b16 %v594
      %v683 = vunpack.c.h.b16 %v594
      %v684 = vunpack.c.l.b16 %v595
      %v685 = vunpack.c.h.b16 %v595
      %v686 = vunpack.c.l.b16 %v596
      %v687 = vunpack.c.h.b16 %v596
      %v688 = vunpack.c.l.b16 %v597
      %v689 = vunpack.c.h.b16 %v597
      %v690 = vunpack.c.l.b16 %v598
      %v691 = vunpack.c.h.b16 %v598
      %v692 = vunpack.c.l.b16 %v599
      %v693 = vunpack.c.h.b16 %v599
      %v694 = vunpack.c.l.b16 %v600
      %v695 = vunpack.c.h.b16 %v600
      %v696 = vunpack.c.l.b16 %v601
      %v697 = vunpack.c.h.b16 %v601
      %v698 = vunpack.c.l.b16 %v602
      %v699 = vunpack.c.h.b16 %v602
      %v700 = vunpack.c.l.b16 %v603
      %v701 = vunpack.c.h.b16 %v603
      %v702 = vunpack.c.l.b16 %v604
      %v703 = vunpack.c.h.b16 %v604
      %v704 = vunpack.c.l.b16 %v605
      %v705 = vunpack.c.h.b16 %v605
      %v706 = vunpack.c.l.b16 %v606
      %v707 = vunpack.c.h.b16 %v606
      %v708 = vpack.c.b16 %v646, %v644
      %v709 = vpack.c.b16 %v647, %v645
      %v710 = vpack.c.b16 %v650, %v648
      %v711 = vpack.c.b16 %v651, %v649
      %v712 = vpack.c.b16 %v654, %v652
      %v713 = vpack.c.b16 %v655, %v653
      %v714 = vpack.c.b16 %v658, %v656
      %v715 = vpack.c.b16 %v659, %v657
      %v716 = vpack.c.b16 %v662, %v660
      %v717 = vpack.c.b16 %v663, %v661
      %v718 = vpack.c.b16 %v666, %v664
      %v719 = vpack.c.b16 %v667, %v665
      %v720 = vpack.c.b16 %v670, %v668
      %v721 = vpack.c.b16 %v671, %v669
      %v722 = vpack.c.b16 %v674, %v672
      %v723 = vpack.c.b16 %v675, %v673
      %v724 = vpack.c.b16 %v678, %v676
      %v725 = vpack.c.b16 %v679, %v677
      %v726 = vpack.c.b16 %v682, %v680
      %v727 = vpack.c.b16 %v683, %v681
      %v728 = vpack.c.b16 %v686, %v684
      %v729 = vpack.c.b16 %v687, %v685
      %v730 = vpack.c.b16 %v690, %v688
      %v731 = vpack.c.b16 %v691, %v689
      %v732 = vpack.c.b16 %v694, %v692
      %v733 = vpack.c.b16 %v695, %v693
      %v734 = vpack.c.b16 %v698, %v696
      %v735 = vpack.c.b16 %v699, %v697
      %v736 = vpack.c.b16 %v702, %v700
      %v737 = vpack.c.b16 %v703, %v701
      %v738 = vpack.c.b16 %v706, %v704
      %v739 = vpack.c.b16 %v707, %v705
      %772 = vmatpush.bf16.msra.mxu0 %v722
      %773 = vmatpush.bf16.msra.mxu0 %v720
      %774 = vmatpush.bf16.msra.mxu0 %v718
      %775 = vmatpush.bf16.msra.mxu0 %v716
      %776 = vmatpush.bf16.msra.mxu0 %v714
      %777 = vmatpush.bf16.msra.mxu0 %v712
      %778 = vmatpush.bf16.msra.mxu0 %v710
      %779 = vmatpush.bf16.msra.mxu0 %v708
      %780 = vmatmul.bf16.gmra.mxu0 %v559
      %v781 = vpop.f32.mrf.mxu0
      %v782 = vadd.f32 %v608, %v781
      %v783 = vpop.f32.mrf.mxu0
      %v784 = vadd.f32 %v608, %v783
      %785 = vmatmul.bf16.gmra.mxu0 %v561
      %v786 = vpop.f32.mrf.mxu0
      %v787 = vadd.f32 %v608, %v786
      %v788 = vpop.f32.mrf.mxu0
      %v789 = vadd.f32 %v608, %v788
      %790 = vmatmul.bf16.gmra.mxu0 %v563
      %v791 = vpop.f32.mrf.mxu0
      %v792 = vadd.f32 %v608, %v791
      %v793 = vpop.f32.mrf.mxu0
      %v794 = vadd.f32 %v608, %v793
      %795 = vmatmul.bf16.gmra.mxu0 %v565
      %v796 = vpop.f32.mrf.mxu0
      %v797 = vadd.f32 %v608, %v796
      %v798 = vpop.f32.mrf.mxu0
      %v799 = vadd.f32 %v608, %v798
      %800 = vmatmul.bf16.gmra.mxu0 %v567
      %v801 = vpop.f32.mrf.mxu0
      %v802 = vadd.f32 %v608, %v801
      %v803 = vpop.f32.mrf.mxu0
      %v804 = vadd.f32 %v608, %v803
      %805 = vmatmul.bf16.gmra.mxu0 %v569
      %v806 = vpop.f32.mrf.mxu0
      %v807 = vadd.f32 %v608, %v806
      %v808 = vpop.f32.mrf.mxu0
      %v809 = vadd.f32 %v608, %v808
      %810 = vmatmul.bf16.gmra.mxu0 %v571
      %v811 = vpop.f32.mrf.mxu0
      %v812 = vadd.f32 %v608, %v811
      %v813 = vpop.f32.mrf.mxu0
      %v814 = vadd.f32 %v608, %v813
      %815 = vmatmul.bf16.gmra.mxu0 %v573
      %v816 = vpop.f32.mrf.mxu0
      %v817 = vadd.f32 %v608, %v816
      %v818 = vpop.f32.mrf.mxu0
      %v819 = vadd.f32 %v608, %v818
      %820 = vdwg.mxu0
      %821 = vmatpush.bf16.msra.mxu0 %v738
      %822 = vmatpush.bf16.msra.mxu0 %v736
      %823 = vmatpush.bf16.msra.mxu0 %v734
      %824 = vmatpush.bf16.msra.mxu0 %v732
      %825 = vmatpush.bf16.msra.mxu0 %v730
      %826 = vmatpush.bf16.msra.mxu0 %v728
      %827 = vmatpush.bf16.msra.mxu0 %v726
      %828 = vmatpush.bf16.msra.mxu0 %v724
      %829 = vmatmul.bf16.gmra.mxu0 %v560
      %v830 = vpop.f32.mrf.mxu0
      %v831 = vadd.f32 %v782, %v830
      %v832 = vpop.f32.mrf.mxu0
      %v833 = vadd.f32 %v784, %v832
      %834 = vmatmul.bf16.gmra.mxu0 %v562
      %v835 = vpop.f32.mrf.mxu0
      %v836 = vadd.f32 %v787, %v835
      %v837 = vpop.f32.mrf.mxu0
      %v838 = vadd.f32 %v789, %v837
      %839 = vmatmul.bf16.gmra.mxu0 %v564
      %v840 = vpop.f32.mrf.mxu0
      %v841 = vadd.f32 %v792, %v840
      %v842 = vpop.f32.mrf.mxu0
      %v843 = vadd.f32 %v794, %v842
      %844 = vmatmul.bf16.gmra.mxu0 %v566
      %v845 = vpop.f32.mrf.mxu0
      %v846 = vadd.f32 %v797, %v845
      %v847 = vpop.f32.mrf.mxu0
      %v848 = vadd.f32 %v799, %v847
      %849 = vmatmul.bf16.gmra.mxu0 %v568
      %v850 = vpop.f32.mrf.mxu0
      %v851 = vadd.f32 %v802, %v850
      %v852 = vpop.f32.mrf.mxu0
      %v853 = vadd.f32 %v804, %v852
      %854 = vmatmul.bf16.gmra.mxu0 %v570
      %v855 = vpop.f32.mrf.mxu0
      %v856 = vadd.f32 %v807, %v855
      %v857 = vpop.f32.mrf.mxu0
      %v858 = vadd.f32 %v809, %v857
      %859 = vmatmul.bf16.gmra.mxu0 %v572
      %v860 = vpop.f32.mrf.mxu0
      %v861 = vadd.f32 %v812, %v860
      %v862 = vpop.f32.mrf.mxu0
      %v863 = vadd.f32 %v814, %v862
      %864 = vmatmul.bf16.gmra.mxu0 %v574
      %v865 = vpop.f32.mrf.mxu0
      %v866 = vadd.f32 %v817, %v865
      %v867 = vpop.f32.mrf.mxu0
      %v868 = vadd.f32 %v819, %v867
      %869 = vdwg.mxu0
      %870 = vmatpush.bf16.msra.mxu0 %v723
      %871 = vmatpush.bf16.msra.mxu0 %v721
      %872 = vmatpush.bf16.msra.mxu0 %v719
      %873 = vmatpush.bf16.msra.mxu0 %v717
      %874 = vmatpush.bf16.msra.mxu0 %v715
      %875 = vmatpush.bf16.msra.mxu0 %v713
      %876 = vmatpush.bf16.msra.mxu0 %v711
      %877 = vmatpush.bf16.msra.mxu0 %v709
      %878 = vmatmul.bf16.gmra.mxu0 %v559
      %v879 = vpop.f32.mrf.mxu0
      %v880 = vadd.f32 %v609, %v879
      %v881 = vpop.f32.mrf.mxu0
      %v882 = vadd.f32 %v609, %v881
      %883 = vmatmul.bf16.gmra.mxu0 %v561
      %v884 = vpop.f32.mrf.mxu0
      %v885 = vadd.f32 %v609, %v884
      %v886 = vpop.f32.mrf.mxu0
      %v887 = vadd.f32 %v609, %v886
      %888 = vmatmul.bf16.gmra.mxu0 %v563
      %v889 = vpop.f32.mrf.mxu0
      %v890 = vadd.f32 %v609, %v889
      %v891 = vpop.f32.mrf.mxu0
      %v892 = vadd.f32 %v609, %v891
      %893 = vmatmul.bf16.gmra.mxu0 %v565
      %v894 = vpop.f32.mrf.mxu0
      %v895 = vadd.f32 %v609, %v894
      %v896 = vpop.f32.mrf.mxu0
      %v897 = vadd.f32 %v609, %v896
      %898 = vmatmul.bf16.gmra.mxu0 %v567
      %v899 = vpop.f32.mrf.mxu0
      %v900 = vadd.f32 %v609, %v899
      %v901 = vpop.f32.mrf.mxu0
      %v902 = vadd.f32 %v609, %v901
      %903 = vmatmul.bf16.gmra.mxu0 %v569
      %v904 = vpop.f32.mrf.mxu0
      %v905 = vadd.f32 %v609, %v904
      %v906 = vpop.f32.mrf.mxu0
      %v907 = vadd.f32 %v609, %v906
      %908 = vmatmul.bf16.gmra.mxu0 %v571
      %v909 = vpop.f32.mrf.mxu0
      %v910 = vadd.f32 %v609, %v909
      %v911 = vpop.f32.mrf.mxu0
      %v912 = vadd.f32 %v609, %v911
      %913 = vmatmul.bf16.gmra.mxu0 %v573
      %v914 = vpop.f32.mrf.mxu0
      %v915 = vadd.f32 %v609, %v914
      %v916 = vpop.f32.mrf.mxu0
      %v917 = vadd.f32 %v609, %v916
      %918 = vdwg.mxu0
      %919 = vmatpush.bf16.msra.mxu0 %v739
      %920 = vmatpush.bf16.msra.mxu0 %v737
      %921 = vmatpush.bf16.msra.mxu0 %v735
      %922 = vmatpush.bf16.msra.mxu0 %v733
      %923 = vmatpush.bf16.msra.mxu0 %v731
      %924 = vmatpush.bf16.msra.mxu0 %v729
      %925 = vmatpush.bf16.msra.mxu0 %v727
      %926 = vmatpush.bf16.msra.mxu0 %v725
      %927 = vmatmul.bf16.gmra.mxu0 %v560
      %v928 = vpop.f32.mrf.mxu0
      %v929 = vadd.f32 %v880, %v928
      %v930 = vpop.f32.mrf.mxu0
      %v931 = vadd.f32 %v882, %v930
      %932 = vmatmul.bf16.gmra.mxu0 %v562
      %v933 = vpop.f32.mrf.mxu0
      %v934 = vadd.f32 %v885, %v933
      %v935 = vpop.f32.mrf.mxu0
      %v936 = vadd.f32 %v887, %v935
      %937 = vmatmul.bf16.gmra.mxu0 %v564
      %v938 = vpop.f32.mrf.mxu0
      %v939 = vadd.f32 %v890, %v938
      %v940 = vpop.f32.mrf.mxu0
      %v941 = vadd.f32 %v892, %v940
      %942 = vmatmul.bf16.gmra.mxu0 %v566
      %v943 = vpop.f32.mrf.mxu0
      %v944 = vadd.f32 %v895, %v943
      %v945 = vpop.f32.mrf.mxu0
      %v946 = vadd.f32 %v897, %v945
      %947 = vmatmul.bf16.gmra.mxu0 %v568
      %v948 = vpop.f32.mrf.mxu0
      %v949 = vadd.f32 %v900, %v948
      %v950 = vpop.f32.mrf.mxu0
      %v951 = vadd.f32 %v902, %v950
      %952 = vmatmul.bf16.gmra.mxu0 %v570
      %v953 = vpop.f32.mrf.mxu0
      %v954 = vadd.f32 %v905, %v953
      %v955 = vpop.f32.mrf.mxu0
      %v956 = vadd.f32 %v907, %v955
      %957 = vmatmul.bf16.gmra.mxu0 %v572
      %v958 = vpop.f32.mrf.mxu0
      %v959 = vadd.f32 %v910, %v958
      %v960 = vpop.f32.mrf.mxu0
      %v961 = vadd.f32 %v912, %v960
      %962 = vmatmul.bf16.gmra.mxu0 %v574
      %v963 = vpop.f32.mrf.mxu0
      %v964 = vadd.f32 %v915, %v963
      %v965 = vpop.f32.mrf.mxu0
      %v966 = vadd.f32 %v917, %v965
      %967 = vdwg.mxu0
      %v968 = vmul.f32 %v831, 0.5
      %v969 = vmul.f32 %v929, 0.5
      %v970 = vmul.f32 %v833, 0.5
      %v971 = vmul.f32 %v931, 0.5
      %v972 = vmul.f32 %v836, 0.5
      %v973 = vmul.f32 %v934, 0.5
      %v974 = vmul.f32 %v838, 0.5
      %v975 = vmul.f32 %v936, 0.5
      %v976 = vmul.f32 %v841, 0.5
      %v977 = vmul.f32 %v939, 0.5
      %v978 = vmul.f32 %v843, 0.5
      %v979 = vmul.f32 %v941, 0.5
      %v980 = vmul.f32 %v846, 0.5
      %v981 = vmul.f32 %v944, 0.5
      %v982 = vmul.f32 %v848, 0.5
      %v983 = vmul.f32 %v946, 0.5
      %v984 = vmul.f32 %v851, 0.5
      %v985 = vmul.f32 %v949, 0.5
      %v986 = vmul.f32 %v853, 0.5
      %v987 = vmul.f32 %v951, 0.5
      %v988 = vmul.f32 %v856, 0.5
      %v989 = vmul.f32 %v954, 0.5
      %v990 = vmul.f32 %v858, 0.5
      %v991 = vmul.f32 %v956, 0.5
      %v992 = vmul.f32 %v861, 0.5
      %v993 = vmul.f32 %v959, 0.5
      %v994 = vmul.f32 %v863, 0.5
      %v995 = vmul.f32 %v961, 0.5
      %v996 = vmul.f32 %v866, 0.5
      %v997 = vmul.f32 %v964, 0.5
      %v998 = vmul.f32 %v868, 0.5
      %v999 = vmul.f32 %v966, 0.5
      %v1000 = vtanh.pop %v968
      %v1001 = vtanh.pop %v969
      %v1002 = vtanh.pop %v970
      %v1003 = vtanh.pop %v971
      %v1004 = vtanh.pop %v972
      %v1005 = vtanh.pop %v973
      %v1006 = vtanh.pop %v974
      %v1007 = vtanh.pop %v975
      %v1008 = vtanh.pop %v976
      %v1009 = vtanh.pop %v977
      %v1010 = vtanh.pop %v978
      %v1011 = vtanh.pop %v979
      %v1012 = vtanh.pop %v980
      %v1013 = vtanh.pop %v981
      %v1014 = vtanh.pop %v982
      %v1015 = vtanh.pop %v983
      %v1016 = vtanh.pop %v984
      %v1017 = vtanh.pop %v985
      %v1018 = vtanh.pop %v986
      %v1019 = vtanh.pop %v987
      %v1020 = vtanh.pop %v988
      %v1021 = vtanh.pop %v989
      %v1022 = vtanh.pop %v990
      %v1023 = vtanh.pop %v991
      %v1024 = vtanh.pop %v992
      %v1025 = vtanh.pop %v993
      %v1026 = vtanh.pop %v994
      %v1027 = vtanh.pop %v995
      %v1028 = vtanh.pop %v996
      %v1029 = vtanh.pop %v997
      %v1030 = vtanh.pop %v998
      %v1031 = vtanh.pop %v999
      %v1032 = vadd.f32 %v1000, 1.0
      %v1033 = vadd.f32 %v1001, 1.0
      %v1034 = vadd.f32 %v1002, 1.0
      %v1035 = vadd.f32 %v1003, 1.0
      %v1036 = vadd.f32 %v1004, 1.0
      %v1037 = vadd.f32 %v1005, 1.0
      %v1038 = vadd.f32 %v1006, 1.0
      %v1039 = vadd.f32 %v1007, 1.0
      %v1040 = vadd.f32 %v1008, 1.0
      %v1041 = vadd.f32 %v1009, 1.0
      %v1042 = vadd.f32 %v1010, 1.0
      %v1043 = vadd.f32 %v1011, 1.0
      %v1044 = vadd.f32 %v1012, 1.0
      %v1045 = vadd.f32 %v1013, 1.0
      %v1046 = vadd.f32 %v1014, 1.0
      %v1047 = vadd.f32 %v1015, 1.0
      %v1048 = vadd.f32 %v1016, 1.0
      %v1049 = vadd.f32 %v1017, 1.0
      %v1050 = vadd.f32 %v1018, 1.0
      %v1051 = vadd.f32 %v1019, 1.0
      %v1052 = vadd.f32 %v1020, 1.0
      %v1053 = vadd.f32 %v1021, 1.0
      %v1054 = vadd.f32 %v1022, 1.0
      %v1055 = vadd.f32 %v1023, 1.0
      %v1056 = vadd.f32 %v1024, 1.0
      %v1057 = vadd.f32 %v1025, 1.0
      %v1058 = vadd.f32 %v1026, 1.0
      %v1059 = vadd.f32 %v1027, 1.0
      %v1060 = vadd.f32 %v1028, 1.0
      %v1061 = vadd.f32 %v1029, 1.0
      %v1062 = vadd.f32 %v1030, 1.0
      %v1063 = vadd.f32 %v1031, 1.0
      %v1064 = vmul.f32 %v968, %v1032
      %v1065 = vmul.f32 %v969, %v1033
      %v1066 = vmul.f32 %v970, %v1034
      %v1067 = vmul.f32 %v971, %v1035
      %v1068 = vmul.f32 %v972, %v1036
      %v1069 = vmul.f32 %v973, %v1037
      %v1070 = vmul.f32 %v974, %v1038
      %v1071 = vmul.f32 %v975, %v1039
      %v1072 = vmul.f32 %v976, %v1040
      %v1073 = vmul.f32 %v977, %v1041
      %v1074 = vmul.f32 %v978, %v1042
      %v1075 = vmul.f32 %v979, %v1043
      %v1076 = vmul.f32 %v980, %v1044
      %v1077 = vmul.f32 %v981, %v1045
      %v1078 = vmul.f32 %v982, %v1046
      %v1079 = vmul.f32 %v983, %v1047
      %v1080 = vmul.f32 %v984, %v1048
      %v1081 = vmul.f32 %v985, %v1049
      %v1082 = vmul.f32 %v986, %v1050
      %v1083 = vmul.f32 %v987, %v1051
      %v1084 = vmul.f32 %v988, %v1052
      %v1085 = vmul.f32 %v989, %v1053
      %v1086 = vmul.f32 %v990, %v1054
      %v1087 = vmul.f32 %v991, %v1055
      %v1088 = vmul.f32 %v992, %v1056
      %v1089 = vmul.f32 %v993, %v1057
      %v1090 = vmul.f32 %v994, %v1058
      %v1091 = vmul.f32 %v995, %v1059
      %v1092 = vmul.f32 %v996, %v1060
      %v1093 = vmul.f32 %v997, %v1061
      %v1094 = vmul.f32 %v998, %v1062
      %v1095 = vmul.f32 %v999, %v1063
      %v1096 = vpack.c.bf16 %v1066, %v1064
      %v1097 = vpack.c.bf16 %v1067, %v1065
      %v1098 = vpack.c.bf16 %v1070, %v1068
      %v1099 = vpack.c.bf16 %v1071, %v1069
      %v1100 = vpack.c.bf16 %v1074, %v1072
      %v1101 = vpack.c.bf16 %v1075, %v1073
      %v1102 = vpack.c.bf16 %v1078, %v1076
      %v1103 = vpack.c.bf16 %v1079, %v1077
      %v1104 = vpack.c.bf16 %v1082, %v1080
      %v1105 = vpack.c.bf16 %v1083, %v1081
      %v1106 = vpack.c.bf16 %v1086, %v1084
      %v1107 = vpack.c.bf16 %v1087, %v1085
      %v1108 = vpack.c.bf16 %v1090, %v1088
      %v1109 = vpack.c.bf16 %v1091, %v1089
      %v1110 = vpack.c.bf16 %v1094, %v1092
      %v1111 = vpack.c.bf16 %v1095, %v1093
      %v1112 = vld [vmem:[%s3] sm:$0xff]
      %v1113 = vld [vmem:[%s3 + $0x8] sm:$0xff]
      %v1114 = vld [vmem:[%s3 + $0x10] sm:$0xff]
      %v1115 = vld [vmem:[%s3 + $0x18] sm:$0xff]
      %v1116 = vld [vmem:[%s3 + $0x20] sm:$0xff]
      %v1117 = vld [vmem:[%s3 + $0x28] sm:$0xff]
      %v1118 = vld [vmem:[%s3 + $0x30] sm:$0xff]
      %v1119 = vld [vmem:[%s3 + $0x38] sm:$0xff]
      %v1120 = vld [vmem:[%s3 + $0x40] sm:$0xff]
      %v1121 = vld [vmem:[%s3 + $0x48] sm:$0xff]
      %v1122 = vld [vmem:[%s3 + $0x50] sm:$0xff]
      %v1123 = vld [vmem:[%s3 + $0x58] sm:$0xff]
      %v1124 = vld [vmem:[%s3 + $0x60] sm:$0xff]
      %v1125 = vld [vmem:[%s3 + $0x68] sm:$0xff]
      %v1126 = vld [vmem:[%s3 + $0x70] sm:$0xff]
      %v1127 = vld [vmem:[%s3 + $0x78] sm:$0xff]
      %v1128 = vld [vmem:[%s3 + $0x80] sm:$0xff]
      %v1129 = vld [vmem:[%s3 + $0x88] sm:$0xff]
      %v1130 = vld [vmem:[%s3 + $0x90] sm:$0xff]
      %v1131 = vld [vmem:[%s3 + $0x98] sm:$0xff]
      %v1132 = vld [vmem:[%s3 + $0xa0] sm:$0xff]
      %v1133 = vld [vmem:[%s3 + $0xa8] sm:$0xff]
      %v1134 = vld [vmem:[%s3 + $0xb0] sm:$0xff]
      %v1135 = vld [vmem:[%s3 + $0xb8] sm:$0xff]
      %v1136 = vld [vmem:[%s3 + $0xc0] sm:$0xff]
      %v1137 = vld [vmem:[%s3 + $0xc8] sm:$0xff]
      %v1138 = vld [vmem:[%s3 + $0xd0] sm:$0xff]
      %v1139 = vld [vmem:[%s3 + $0xd8] sm:$0xff]
      %v1140 = vld [vmem:[%s3 + $0xe0] sm:$0xff]
      %v1141 = vld [vmem:[%s3 + $0xe8] sm:$0xff]
      %v1142 = vld [vmem:[%s3 + $0xf0] sm:$0xff]
      %v1143 = vld [vmem:[%s3 + $0xf8] sm:$0xff]
      %v1145 = vperm.slane %v230, 0
      %v1146 = vperm.slane %v230, 1
      %v1181 = vunpack.c.l.b16 %v1112
      %v1182 = vunpack.c.h.b16 %v1112
      %v1183 = vunpack.c.l.b16 %v1113
      %v1184 = vunpack.c.h.b16 %v1113
      %v1185 = vunpack.c.l.b16 %v1114
      %v1186 = vunpack.c.h.b16 %v1114
      %v1187 = vunpack.c.l.b16 %v1115
      %v1188 = vunpack.c.h.b16 %v1115
      %v1189 = vunpack.c.l.b16 %v1116
      %v1190 = vunpack.c.h.b16 %v1116
      %v1191 = vunpack.c.l.b16 %v1117
      %v1192 = vunpack.c.h.b16 %v1117
      %v1193 = vunpack.c.l.b16 %v1118
      %v1194 = vunpack.c.h.b16 %v1118
      %v1195 = vunpack.c.l.b16 %v1119
      %v1196 = vunpack.c.h.b16 %v1119
      %v1197 = vunpack.c.l.b16 %v1120
      %v1198 = vunpack.c.h.b16 %v1120
      %v1199 = vunpack.c.l.b16 %v1121
      %v1200 = vunpack.c.h.b16 %v1121
      %v1201 = vunpack.c.l.b16 %v1122
      %v1202 = vunpack.c.h.b16 %v1122
      %v1203 = vunpack.c.l.b16 %v1123
      %v1204 = vunpack.c.h.b16 %v1123
      %v1205 = vunpack.c.l.b16 %v1124
      %v1206 = vunpack.c.h.b16 %v1124
      %v1207 = vunpack.c.l.b16 %v1125
      %v1208 = vunpack.c.h.b16 %v1125
      %v1209 = vunpack.c.l.b16 %v1126
      %v1210 = vunpack.c.h.b16 %v1126
      %v1211 = vunpack.c.l.b16 %v1127
      %v1212 = vunpack.c.h.b16 %v1127
      %v1213 = vunpack.c.l.b16 %v1128
      %v1214 = vunpack.c.h.b16 %v1128
      %v1215 = vunpack.c.l.b16 %v1129
      %v1216 = vunpack.c.h.b16 %v1129
      %v1217 = vunpack.c.l.b16 %v1130
      %v1218 = vunpack.c.h.b16 %v1130
      %v1219 = vunpack.c.l.b16 %v1131
      %v1220 = vunpack.c.h.b16 %v1131
      %v1221 = vunpack.c.l.b16 %v1132
      %v1222 = vunpack.c.h.b16 %v1132
      %v1223 = vunpack.c.l.b16 %v1133
      %v1224 = vunpack.c.h.b16 %v1133
      %v1225 = vunpack.c.l.b16 %v1134
      %v1226 = vunpack.c.h.b16 %v1134
      %v1227 = vunpack.c.l.b16 %v1135
      %v1228 = vunpack.c.h.b16 %v1135
      %v1229 = vunpack.c.l.b16 %v1136
      %v1230 = vunpack.c.h.b16 %v1136
      %v1231 = vunpack.c.l.b16 %v1137
      %v1232 = vunpack.c.h.b16 %v1137
      %v1233 = vunpack.c.l.b16 %v1138
      %v1234 = vunpack.c.h.b16 %v1138
      %v1235 = vunpack.c.l.b16 %v1139
      %v1236 = vunpack.c.h.b16 %v1139
      %v1237 = vunpack.c.l.b16 %v1140
      %v1238 = vunpack.c.h.b16 %v1140
      %v1239 = vunpack.c.l.b16 %v1141
      %v1240 = vunpack.c.h.b16 %v1141
      %v1241 = vunpack.c.l.b16 %v1142
      %v1242 = vunpack.c.h.b16 %v1142
      %v1243 = vunpack.c.l.b16 %v1143
      %v1244 = vunpack.c.h.b16 %v1143
      %v1245 = vpack.c.b16 %v1183, %v1181
      %v1246 = vpack.c.b16 %v1184, %v1182
      %v1247 = vpack.c.b16 %v1187, %v1185
      %v1248 = vpack.c.b16 %v1188, %v1186
      %v1249 = vpack.c.b16 %v1191, %v1189
      %v1250 = vpack.c.b16 %v1192, %v1190
      %v1251 = vpack.c.b16 %v1195, %v1193
      %v1252 = vpack.c.b16 %v1196, %v1194
      %v1253 = vpack.c.b16 %v1199, %v1197
      %v1254 = vpack.c.b16 %v1200, %v1198
      %v1255 = vpack.c.b16 %v1203, %v1201
      %v1256 = vpack.c.b16 %v1204, %v1202
      %v1257 = vpack.c.b16 %v1207, %v1205
      %v1258 = vpack.c.b16 %v1208, %v1206
      %v1259 = vpack.c.b16 %v1211, %v1209
      %v1260 = vpack.c.b16 %v1212, %v1210
      %v1261 = vpack.c.b16 %v1215, %v1213
      %v1262 = vpack.c.b16 %v1216, %v1214
      %v1263 = vpack.c.b16 %v1219, %v1217
      %v1264 = vpack.c.b16 %v1220, %v1218
      %v1265 = vpack.c.b16 %v1223, %v1221
      %v1266 = vpack.c.b16 %v1224, %v1222
      %v1267 = vpack.c.b16 %v1227, %v1225
      %v1268 = vpack.c.b16 %v1228, %v1226
      %v1269 = vpack.c.b16 %v1231, %v1229
      %v1270 = vpack.c.b16 %v1232, %v1230
      %v1271 = vpack.c.b16 %v1235, %v1233
      %v1272 = vpack.c.b16 %v1236, %v1234
      %v1273 = vpack.c.b16 %v1239, %v1237
      %v1274 = vpack.c.b16 %v1240, %v1238
      %v1275 = vpack.c.b16 %v1243, %v1241
      %v1276 = vpack.c.b16 %v1244, %v1242
      %1309 = vmatpush.bf16.msra.mxu0 %v1259
      %1310 = vmatpush.bf16.msra.mxu0 %v1257
      %1311 = vmatpush.bf16.msra.mxu0 %v1255
      %1312 = vmatpush.bf16.msra.mxu0 %v1253
      %1313 = vmatpush.bf16.msra.mxu0 %v1251
      %1314 = vmatpush.bf16.msra.mxu0 %v1249
      %1315 = vmatpush.bf16.msra.mxu0 %v1247
      %1316 = vmatpush.bf16.msra.mxu0 %v1245
      %1317 = vmatmul.bf16.gmra.mxu0 %v1096
      %v1318 = vpop.f32.mrf.mxu0
      %v1319 = vadd.f32 %v1145, %v1318
      %v1320 = vpop.f32.mrf.mxu0
      %v1321 = vadd.f32 %v1145, %v1320
      %1322 = vmatmul.bf16.gmra.mxu0 %v1098
      %v1323 = vpop.f32.mrf.mxu0
      %v1324 = vadd.f32 %v1145, %v1323
      %v1325 = vpop.f32.mrf.mxu0
      %v1326 = vadd.f32 %v1145, %v1325
      %1327 = vmatmul.bf16.gmra.mxu0 %v1100
      %v1328 = vpop.f32.mrf.mxu0
      %v1329 = vadd.f32 %v1145, %v1328
      %v1330 = vpop.f32.mrf.mxu0
      %v1331 = vadd.f32 %v1145, %v1330
      %1332 = vmatmul.bf16.gmra.mxu0 %v1102
      %v1333 = vpop.f32.mrf.mxu0
      %v1334 = vadd.f32 %v1145, %v1333
      %v1335 = vpop.f32.mrf.mxu0
      %v1336 = vadd.f32 %v1145, %v1335
      %1337 = vmatmul.bf16.gmra.mxu0 %v1104
      %v1338 = vpop.f32.mrf.mxu0
      %v1339 = vadd.f32 %v1145, %v1338
      %v1340 = vpop.f32.mrf.mxu0
      %v1341 = vadd.f32 %v1145, %v1340
      %1342 = vmatmul.bf16.gmra.mxu0 %v1106
      %v1343 = vpop.f32.mrf.mxu0
      %v1344 = vadd.f32 %v1145, %v1343
      %v1345 = vpop.f32.mrf.mxu0
      %v1346 = vadd.f32 %v1145, %v1345
      %1347 = vmatmul.bf16.gmra.mxu0 %v1108
      %v1348 = vpop.f32.mrf.mxu0
      %v1349 = vadd.f32 %v1145, %v1348
      %v1350 = vpop.f32.mrf.mxu0
      %v1351 = vadd.f32 %v1145, %v1350
      %1352 = vmatmul.bf16.gmra.mxu0 %v1110
      %v1353 = vpop.f32.mrf.mxu0
      %v1354 = vadd.f32 %v1145, %v1353
      %v1355 = vpop.f32.mrf.mxu0
      %v1356 = vadd.f32 %v1145, %v1355
      %1357 = vdwg.mxu0
      %1358 = vmatpush.bf16.msra.mxu0 %v1275
      %1359 = vmatpush.bf16.msra.mxu0 %v1273
      %1360 = vmatpush.bf16.msra.mxu0 %v1271
      %1361 = vmatpush.bf16.msra.mxu0 %v1269
      %1362 = vmatpush.bf16.msra.mxu0 %v1267
      %1363 = vmatpush.bf16.msra.mxu0 %v1265
      %1364 = vmatpush.bf16.msra.mxu0 %v1263
      %1365 = vmatpush.bf16.msra.mxu0 %v1261
      %1366 = vmatmul.bf16.gmra.mxu0 %v1097
      %v1367 = vpop.f32.mrf.mxu0
      %v1368 = vadd.f32 %v1319, %v1367
      %v1369 = vpop.f32.mrf.mxu0
      %v1370 = vadd.f32 %v1321, %v1369
      %1371 = vmatmul.bf16.gmra.mxu0 %v1099
      %v1372 = vpop.f32.mrf.mxu0
      %v1373 = vadd.f32 %v1324, %v1372
      %v1374 = vpop.f32.mrf.mxu0
      %v1375 = vadd.f32 %v1326, %v1374
      %1376 = vmatmul.bf16.gmra.mxu0 %v1101
      %v1377 = vpop.f32.mrf.mxu0
      %v1378 = vadd.f32 %v1329, %v1377
      %v1379 = vpop.f32.mrf.mxu0
      %v1380 = vadd.f32 %v1331, %v1379
      %1381 = vmatmul.bf16.gmra.mxu0 %v1103
      %v1382 = vpop.f32.mrf.mxu0
      %v1383 = vadd.f32 %v1334, %v1382
      %v1384 = vpop.f32.mrf.mxu0
      %v1385 = vadd.f32 %v1336, %v1384
      %1386 = vmatmul.bf16.gmra.mxu0 %v1105
      %v1387 = vpop.f32.mrf.mxu0
      %v1388 = vadd.f32 %v1339, %v1387
      %v1389 = vpop.f32.mrf.mxu0
      %v1390 = vadd.f32 %v1341, %v1389
      %1391 = vmatmul.bf16.gmra.mxu0 %v1107
      %v1392 = vpop.f32.mrf.mxu0
      %v1393 = vadd.f32 %v1344, %v1392
      %v1394 = vpop.f32.mrf.mxu0
      %v1395 = vadd.f32 %v1346, %v1394
      %1396 = vmatmul.bf16.gmra.mxu0 %v1109
      %v1397 = vpop.f32.mrf.mxu0
      %v1398 = vadd.f32 %v1349, %v1397
      %v1399 = vpop.f32.mrf.mxu0
      %v1400 = vadd.f32 %v1351, %v1399
      %1401 = vmatmul.bf16.gmra.mxu0 %v1111
      %v1402 = vpop.f32.mrf.mxu0
      %v1403 = vadd.f32 %v1354, %v1402
      %v1404 = vpop.f32.mrf.mxu0
      %v1405 = vadd.f32 %v1356, %v1404
      %1406 = vdwg.mxu0
      %1407 = vmatpush.bf16.msra.mxu0 %v1260
      %1408 = vmatpush.bf16.msra.mxu0 %v1258
      %1409 = vmatpush.bf16.msra.mxu0 %v1256
      %1410 = vmatpush.bf16.msra.mxu0 %v1254
      %1411 = vmatpush.bf16.msra.mxu0 %v1252
      %1412 = vmatpush.bf16.msra.mxu0 %v1250
      %1413 = vmatpush.bf16.msra.mxu0 %v1248
      %1414 = vmatpush.bf16.msra.mxu0 %v1246
      %1415 = vmatmul.bf16.gmra.mxu0 %v1096
      %v1416 = vpop.f32.mrf.mxu0
      %v1417 = vadd.f32 %v1146, %v1416
      %v1418 = vpop.f32.mrf.mxu0
      %v1419 = vadd.f32 %v1146, %v1418
      %1420 = vmatmul.bf16.gmra.mxu0 %v1098
      %v1421 = vpop.f32.mrf.mxu0
      %v1422 = vadd.f32 %v1146, %v1421
      %v1423 = vpop.f32.mrf.mxu0
      %v1424 = vadd.f32 %v1146, %v1423
      %1425 = vmatmul.bf16.gmra.mxu0 %v1100
      %v1426 = vpop.f32.mrf.mxu0
      %v1427 = vadd.f32 %v1146, %v1426
      %v1428 = vpop.f32.mrf.mxu0
      %v1429 = vadd.f32 %v1146, %v1428
      %1430 = vmatmul.bf16.gmra.mxu0 %v1102
      %v1431 = vpop.f32.mrf.mxu0
      %v1432 = vadd.f32 %v1146, %v1431
      %v1433 = vpop.f32.mrf.mxu0
      %v1434 = vadd.f32 %v1146, %v1433
      %1435 = vmatmul.bf16.gmra.mxu0 %v1104
      %v1436 = vpop.f32.mrf.mxu0
      %v1437 = vadd.f32 %v1146, %v1436
      %v1438 = vpop.f32.mrf.mxu0
      %v1439 = vadd.f32 %v1146, %v1438
      %1440 = vmatmul.bf16.gmra.mxu0 %v1106
      %v1441 = vpop.f32.mrf.mxu0
      %v1442 = vadd.f32 %v1146, %v1441
      %v1443 = vpop.f32.mrf.mxu0
      %v1444 = vadd.f32 %v1146, %v1443
      %1445 = vmatmul.bf16.gmra.mxu0 %v1108
      %v1446 = vpop.f32.mrf.mxu0
      %v1447 = vadd.f32 %v1146, %v1446
      %v1448 = vpop.f32.mrf.mxu0
      %v1449 = vadd.f32 %v1146, %v1448
      %1450 = vmatmul.bf16.gmra.mxu0 %v1110
      %v1451 = vpop.f32.mrf.mxu0
      %v1452 = vadd.f32 %v1146, %v1451
      %v1453 = vpop.f32.mrf.mxu0
      %v1454 = vadd.f32 %v1146, %v1453
      %1455 = vdwg.mxu0
      %1456 = vmatpush.bf16.msra.mxu0 %v1276
      %1457 = vmatpush.bf16.msra.mxu0 %v1274
      %1458 = vmatpush.bf16.msra.mxu0 %v1272
      %1459 = vmatpush.bf16.msra.mxu0 %v1270
      %1460 = vmatpush.bf16.msra.mxu0 %v1268
      %1461 = vmatpush.bf16.msra.mxu0 %v1266
      %1462 = vmatpush.bf16.msra.mxu0 %v1264
      %1463 = vmatpush.bf16.msra.mxu0 %v1262
      %1464 = vmatmul.bf16.gmra.mxu0 %v1097
      %v1465 = vpop.f32.mrf.mxu0
      %v1466 = vadd.f32 %v1417, %v1465
      %v1467 = vpop.f32.mrf.mxu0
      %v1468 = vadd.f32 %v1419, %v1467
      %1469 = vmatmul.bf16.gmra.mxu0 %v1099
      %v1470 = vpop.f32.mrf.mxu0
      %v1471 = vadd.f32 %v1422, %v1470
      %v1472 = vpop.f32.mrf.mxu0
      %v1473 = vadd.f32 %v1424, %v1472
      %1474 = vmatmul.bf16.gmra.mxu0 %v1101
      %v1475 = vpop.f32.mrf.mxu0
      %v1476 = vadd.f32 %v1427, %v1475
      %v1477 = vpop.f32.mrf.mxu0
      %v1478 = vadd.f32 %v1429, %v1477
      %1479 = vmatmul.bf16.gmra.mxu0 %v1103
      %v1480 = vpop.f32.mrf.mxu0
      %v1481 = vadd.f32 %v1432, %v1480
      %v1482 = vpop.f32.mrf.mxu0
      %v1483 = vadd.f32 %v1434, %v1482
      %1484 = vmatmul.bf16.gmra.mxu0 %v1105
      %v1485 = vpop.f32.mrf.mxu0
      %v1486 = vadd.f32 %v1437, %v1485
      %v1487 = vpop.f32.mrf.mxu0
      %v1488 = vadd.f32 %v1439, %v1487
      %1489 = vmatmul.bf16.gmra.mxu0 %v1107
      %v1490 = vpop.f32.mrf.mxu0
      %v1491 = vadd.f32 %v1442, %v1490
      %v1492 = vpop.f32.mrf.mxu0
      %v1493 = vadd.f32 %v1444, %v1492
      %1494 = vmatmul.bf16.gmra.mxu0 %v1109
      %v1495 = vpop.f32.mrf.mxu0
      %v1496 = vadd.f32 %v1447, %v1495
      %v1497 = vpop.f32.mrf.mxu0
      %v1498 = vadd.f32 %v1449, %v1497
      %1499 = vmatmul.bf16.gmra.mxu0 %v1111
      %v1500 = vpop.f32.mrf.mxu0
      %v1501 = vadd.f32 %v1452, %v1500
      %v1502 = vpop.f32.mrf.mxu0
      %v1503 = vadd.f32 %v1454, %v1502
      %1504 = vdwg.mxu0
      %v1505 = vmul.f32 %v1368, 0.5
      %v1506 = vmul.f32 %v1466, 0.5
      %v1507 = vmul.f32 %v1370, 0.5
      %v1508 = vmul.f32 %v1468, 0.5
      %v1509 = vmul.f32 %v1373, 0.5
      %v1510 = vmul.f32 %v1471, 0.5
      %v1511 = vmul.f32 %v1375, 0.5
      %v1512 = vmul.f32 %v1473, 0.5
      %v1513 = vmul.f32 %v1378, 0.5
      %v1514 = vmul.f32 %v1476, 0.5
      %v1515 = vmul.f32 %v1380, 0.5
      %v1516 = vmul.f32 %v1478, 0.5
      %v1517 = vmul.f32 %v1383, 0.5
      %v1518 = vmul.f32 %v1481, 0.5
      %v1519 = vmul.f32 %v1385, 0.5
      %v1520 = vmul.f32 %v1483, 0.5
      %v1521 = vmul.f32 %v1388, 0.5
      %v1522 = vmul.f32 %v1486, 0.5
      %v1523 = vmul.f32 %v1390, 0.5
      %v1524 = vmul.f32 %v1488, 0.5
      %v1525 = vmul.f32 %v1393, 0.5
      %v1526 = vmul.f32 %v1491, 0.5
      %v1527 = vmul.f32 %v1395, 0.5
      %v1528 = vmul.f32 %v1493, 0.5
      %v1529 = vmul.f32 %v1398, 0.5
      %v1530 = vmul.f32 %v1496, 0.5
      %v1531 = vmul.f32 %v1400, 0.5
      %v1532 = vmul.f32 %v1498, 0.5
      %v1533 = vmul.f32 %v1403, 0.5
      %v1534 = vmul.f32 %v1501, 0.5
      %v1535 = vmul.f32 %v1405, 0.5
      %v1536 = vmul.f32 %v1503, 0.5
      %v1537 = vtanh.pop %v1505
      %v1538 = vtanh.pop %v1506
      %v1539 = vtanh.pop %v1507
      %v1540 = vtanh.pop %v1508
      %v1541 = vtanh.pop %v1509
      %v1542 = vtanh.pop %v1510
      %v1543 = vtanh.pop %v1511
      %v1544 = vtanh.pop %v1512
      %v1545 = vtanh.pop %v1513
      %v1546 = vtanh.pop %v1514
      %v1547 = vtanh.pop %v1515
      %v1548 = vtanh.pop %v1516
      %v1549 = vtanh.pop %v1517
      %v1550 = vtanh.pop %v1518
      %v1551 = vtanh.pop %v1519
      %v1552 = vtanh.pop %v1520
      %v1553 = vtanh.pop %v1521
      %v1554 = vtanh.pop %v1522
      %v1555 = vtanh.pop %v1523
      %v1556 = vtanh.pop %v1524
      %v1557 = vtanh.pop %v1525
      %v1558 = vtanh.pop %v1526
      %v1559 = vtanh.pop %v1527
      %v1560 = vtanh.pop %v1528
      %v1561 = vtanh.pop %v1529
      %v1562 = vtanh.pop %v1530
      %v1563 = vtanh.pop %v1531
      %v1564 = vtanh.pop %v1532
      %v1565 = vtanh.pop %v1533
      %v1566 = vtanh.pop %v1534
      %v1567 = vtanh.pop %v1535
      %v1568 = vtanh.pop %v1536
      %v1569 = vadd.f32 %v1537, 1.0
      %v1570 = vadd.f32 %v1538, 1.0
      %v1571 = vadd.f32 %v1539, 1.0
      %v1572 = vadd.f32 %v1540, 1.0
      %v1573 = vadd.f32 %v1541, 1.0
      %v1574 = vadd.f32 %v1542, 1.0
      %v1575 = vadd.f32 %v1543, 1.0
      %v1576 = vadd.f32 %v1544, 1.0
      %v1577 = vadd.f32 %v1545, 1.0
      %v1578 = vadd.f32 %v1546, 1.0
      %v1579 = vadd.f32 %v1547, 1.0
      %v1580 = vadd.f32 %v1548, 1.0
      %v1581 = vadd.f32 %v1549, 1.0
      %v1582 = vadd.f32 %v1550, 1.0
      %v1583 = vadd.f32 %v1551, 1.0
      %v1584 = vadd.f32 %v1552, 1.0
      %v1585 = vadd.f32 %v1553, 1.0
      %v1586 = vadd.f32 %v1554, 1.0
      %v1587 = vadd.f32 %v1555, 1.0
      %v1588 = vadd.f32 %v1556, 1.0
      %v1589 = vadd.f32 %v1557, 1.0
      %v1590 = vadd.f32 %v1558, 1.0
      %v1591 = vadd.f32 %v1559, 1.0
      %v1592 = vadd.f32 %v1560, 1.0
      %v1593 = vadd.f32 %v1561, 1.0
      %v1594 = vadd.f32 %v1562, 1.0
      %v1595 = vadd.f32 %v1563, 1.0
      %v1596 = vadd.f32 %v1564, 1.0
      %v1597 = vadd.f32 %v1565, 1.0
      %v1598 = vadd.f32 %v1566, 1.0
      %v1599 = vadd.f32 %v1567, 1.0
      %v1600 = vadd.f32 %v1568, 1.0
      %v1601 = vmul.f32 %v1505, %v1569
      %v1602 = vmul.f32 %v1506, %v1570
      %v1603 = vmul.f32 %v1507, %v1571
      %v1604 = vmul.f32 %v1508, %v1572
      %v1605 = vmul.f32 %v1509, %v1573
      %v1606 = vmul.f32 %v1510, %v1574
      %v1607 = vmul.f32 %v1511, %v1575
      %v1608 = vmul.f32 %v1512, %v1576
      %v1609 = vmul.f32 %v1513, %v1577
      %v1610 = vmul.f32 %v1514, %v1578
      %v1611 = vmul.f32 %v1515, %v1579
      %v1612 = vmul.f32 %v1516, %v1580
      %v1613 = vmul.f32 %v1517, %v1581
      %v1614 = vmul.f32 %v1518, %v1582
      %v1615 = vmul.f32 %v1519, %v1583
      %v1616 = vmul.f32 %v1520, %v1584
      %v1617 = vmul.f32 %v1521, %v1585
      %v1618 = vmul.f32 %v1522, %v1586
      %v1619 = vmul.f32 %v1523, %v1587
      %v1620 = vmul.f32 %v1524, %v1588
      %v1621 = vmul.f32 %v1525, %v1589
      %v1622 = vmul.f32 %v1526, %v1590
      %v1623 = vmul.f32 %v1527, %v1591
      %v1624 = vmul.f32 %v1528, %v1592
      %v1625 = vmul.f32 %v1529, %v1593
      %v1626 = vmul.f32 %v1530, %v1594
      %v1627 = vmul.f32 %v1531, %v1595
      %v1628 = vmul.f32 %v1532, %v1596
      %v1629 = vmul.f32 %v1533, %v1597
      %v1630 = vmul.f32 %v1534, %v1598
      %v1631 = vmul.f32 %v1535, %v1599
      %v1632 = vmul.f32 %v1536, %v1600
      %v1634 = vperm.slane %v232, 0
      %v1635 = vperm.slane %v232, 1
      %v1638 = vmul.f32 %v1601, %v1634
      %v1639 = vmul.f32 %v1602, %v1635
      %v1640 = vmul.f32 %v1603, %v1634
      %v1641 = vmul.f32 %v1604, %v1635
      %v1642 = vmul.f32 %v1605, %v1634
      %v1643 = vmul.f32 %v1606, %v1635
      %v1644 = vmul.f32 %v1607, %v1634
      %v1645 = vmul.f32 %v1608, %v1635
      %v1646 = vmul.f32 %v1609, %v1634
      %v1647 = vmul.f32 %v1610, %v1635
      %v1648 = vmul.f32 %v1611, %v1634
      %v1649 = vmul.f32 %v1612, %v1635
      %v1650 = vmul.f32 %v1613, %v1634
      %v1651 = vmul.f32 %v1614, %v1635
      %v1652 = vmul.f32 %v1615, %v1634
      %v1653 = vmul.f32 %v1616, %v1635
      %v1654 = vmul.f32 %v1617, %v1634
      %v1655 = vmul.f32 %v1618, %v1635
      %v1656 = vmul.f32 %v1619, %v1634
      %v1657 = vmul.f32 %v1620, %v1635
      %v1658 = vmul.f32 %v1621, %v1634
      %v1659 = vmul.f32 %v1622, %v1635
      %v1660 = vmul.f32 %v1623, %v1634
      %v1661 = vmul.f32 %v1624, %v1635
      %v1662 = vmul.f32 %v1625, %v1634
      %v1663 = vmul.f32 %v1626, %v1635
      %v1664 = vmul.f32 %v1627, %v1634
      %v1665 = vmul.f32 %v1628, %v1635
      %v1666 = vmul.f32 %v1629, %v1634
      %v1667 = vmul.f32 %v1630, %v1635
      %v1668 = vmul.f32 %v1631, %v1634
      %v1669 = vmul.f32 %v1632, %v1635
      %v1670 = vadd.f32 %v1638, %v1639
      %v1671 = vadd.f32 %v1640, %v1641
      %v1672 = vadd.f32 %v1642, %v1643
      %v1673 = vadd.f32 %v1644, %v1645
      %v1674 = vadd.f32 %v1646, %v1647
      %v1675 = vadd.f32 %v1648, %v1649
      %v1676 = vadd.f32 %v1650, %v1651
      %v1677 = vadd.f32 %v1652, %v1653
      %v1678 = vadd.f32 %v1654, %v1655
      %v1679 = vadd.f32 %v1656, %v1657
      %v1680 = vadd.f32 %v1658, %v1659
      %v1681 = vadd.f32 %v1660, %v1661
      %v1682 = vadd.f32 %v1662, %v1663
      %v1683 = vadd.f32 %v1664, %v1665
      %v1684 = vadd.f32 %v1666, %v1667
      %v1685 = vadd.f32 %v1668, %v1669
      %1686 = vadd.xlane.f32.xlu0 %v1670
      %v1687 = vpop.xlane.xlu0 %1686
      %1688 = vadd.xlane.f32.xlu0 %v1671
      %v1689 = vpop.xlane.xlu0 %1688
      %1690 = vadd.xlane.f32.xlu0 %v1672
      %v1691 = vpop.xlane.xlu0 %1690
      %1692 = vadd.xlane.f32.xlu0 %v1673
      %v1693 = vpop.xlane.xlu0 %1692
      %1694 = vadd.xlane.f32.xlu0 %v1674
      %v1695 = vpop.xlane.xlu0 %1694
      %1696 = vadd.xlane.f32.xlu0 %v1675
      %v1697 = vpop.xlane.xlu0 %1696
      %1698 = vadd.xlane.f32.xlu0 %v1676
      %v1699 = vpop.xlane.xlu0 %1698
      %1700 = vadd.xlane.f32.xlu0 %v1677
      %v1701 = vpop.xlane.xlu0 %1700
      %1702 = vadd.xlane.f32.xlu0 %v1678
      %v1703 = vpop.xlane.xlu0 %1702
      %1704 = vadd.xlane.f32.xlu0 %v1679
      %v1705 = vpop.xlane.xlu0 %1704
      %1706 = vadd.xlane.f32.xlu0 %v1680
      %v1707 = vpop.xlane.xlu0 %1706
      %1708 = vadd.xlane.f32.xlu0 %v1681
      %v1709 = vpop.xlane.xlu0 %1708
      %1710 = vadd.xlane.f32.xlu0 %v1682
      %v1711 = vpop.xlane.xlu0 %1710
      %1712 = vadd.xlane.f32.xlu0 %v1683
      %v1713 = vpop.xlane.xlu0 %1712
      %1714 = vadd.xlane.f32.xlu0 %v1684
      %v1715 = vpop.xlane.xlu0 %1714
      %1716 = vadd.xlane.f32.xlu0 %v1685
      %v1717 = vpop.xlane.xlu0 %1716
      %v1718 = vadd.f32 %v1687, %v233
      %v1719 = vadd.f32 %v1689, %v233
      %v1720 = vadd.f32 %v1691, %v233
      %v1721 = vadd.f32 %v1693, %v233
      %v1722 = vadd.f32 %v1695, %v233
      %v1723 = vadd.f32 %v1697, %v233
      %v1724 = vadd.f32 %v1699, %v233
      %v1725 = vadd.f32 %v1701, %v233
      %v1726 = vadd.f32 %v1703, %v233
      %v1727 = vadd.f32 %v1705, %v233
      %v1728 = vadd.f32 %v1707, %v233
      %v1729 = vadd.f32 %v1709, %v233
      %v1730 = vadd.f32 %v1711, %v233
      %v1731 = vadd.f32 %v1713, %v233
      %v1732 = vadd.f32 %v1715, %v233
      %v1733 = vadd.f32 %v1717, %v233
      %vm1734 = vcmask 7168
      %1735 = vst.msk [vmem:[%s226] sm:$0xff] %vm1734, %v1718
      %1736 = vst.msk [vmem:[%s226 + $0x8] sm:$0xff] %vm1734, %v1719
      %1737 = vst.msk [vmem:[%s226 + $0x10] sm:$0xff] %vm1734, %v1720
      %1738 = vst.msk [vmem:[%s226 + $0x18] sm:$0xff] %vm1734, %v1721
      %1739 = vst.msk [vmem:[%s226 + $0x20] sm:$0xff] %vm1734, %v1722
      %1740 = vst.msk [vmem:[%s226 + $0x28] sm:$0xff] %vm1734, %v1723
      %1741 = vst.msk [vmem:[%s226 + $0x30] sm:$0xff] %vm1734, %v1724
      %1742 = vst.msk [vmem:[%s226 + $0x38] sm:$0xff] %vm1734, %v1725
      %1743 = vst.msk [vmem:[%s226 + $0x40] sm:$0xff] %vm1734, %v1726
      %1744 = vst.msk [vmem:[%s226 + $0x48] sm:$0xff] %vm1734, %v1727
      %1745 = vst.msk [vmem:[%s226 + $0x50] sm:$0xff] %vm1734, %v1728
      %1746 = vst.msk [vmem:[%s226 + $0x58] sm:$0xff] %vm1734, %v1729
      %1747 = vst.msk [vmem:[%s226 + $0x60] sm:$0xff] %vm1734, %v1730
      %1748 = vst.msk [vmem:[%s226 + $0x68] sm:$0xff] %vm1734, %v1731
      %1749 = vst.msk [vmem:[%s226 + $0x70] sm:$0xff] %vm1734, %v1732
      %1750 = vst.msk [vmem:[%s226 + $0x78] sm:$0xff] %vm1734, %v1733
      %s1751 = smul.u32 16, %s16
      %p1752 = scmp.lt.s32.totalorder %s1751, 31
      %s1753 = scalar_select %p1752, %s1751, 31
      %s1754 = smul.addr %s1753, 8
      %s1755 = scalar_lea.vmem %s5, %s1754
      // Predicated region
      $region41: #{mushydata_forward.1} parent=39 // pred_check
        %p1756 = pneg %p144
      $region42: #{mushydata_forward.1} parent=39 // pred_check_branch
        %1758 = sbr.rel (%p1756) target = $region44
      $region43: #{mushydata_forward.1} parent=39 // pred_region
        %s1759 = smul.u32 16, %s16
      $region44: #{mushydata_forward.1} parent=39 // pred_fallthru
        _
    $region40: #{mushydata_forward.1} parent=5 // pred_fallthru
      _
    %p1760 = scmp.le.s32.totalorder 2, %s11
    // Predicated region
    $region45: #{mushydata_forward.1} parent=5 // pred_check
      %p1761 = pneg %p1760
    $region46: #{mushydata_forward.1} parent=5 // pred_check_branch
      %1763 = sbr.rel (%p1761) target = $region48
    $region47: #{mushydata_forward.1} parent=5 // pred_region
      %s1764 = ssub.s32 %s11, 2
      // Predicated region
      $region49: #{mushydata_forward.1} parent=47 // pred_check
        %p1765 = pneg %p150
      $region50: #{mushydata_forward.1} parent=47 // pred_check_branch
        %1767 = sbr.rel (%p1765) target = $region52
      $region51: #{mushydata_forward.1} parent=47 // pred_region
        %s1768 = smul.u32 16, %s17
        %p1769 = scmp.lt.s32.totalorder %s1768, 31
        %s1770 = scalar_select %p1769, %s1768, 31
        %s1771 = smul.addr %s1770, 8
        %s1772 = scalar_lea.vmem %s5, %s1771
      $region52: #{mushydata_forward.1} parent=47 // pred_fallthru
        _
    $region48: #{mushydata_forward.1} parent=5 // pred_fallthru
      _
  $region6: #{mushydata_forward.1} parent=0 // loop_footer
    %s15 = sadd.s32 1, %s11
  $region7: #{mushydata_forward.1} parent=0 // loop_footer_branch
    %10 = sbr.rel target = $region3
  $region8: #{mushydata_forward.1} parent=0 // loop_exit
    _

</llo_original>
